<compile_context>
chip_gen: v5e
topology: v5e:2x2
jax: 0.10.0
libtpu: 0.0.40
codegen_flags: <defaults>
</compile_context>

<pallas_src>
import functools

import jax
import jax.numpy as jnp
from jax.experimental import pallas as pl
from jax.experimental.pallas import tpu as pltpu


# ----------------------------------------------------------------------------
# Device-generation flags (bf16 VPU availability, VMEM size class)
# ----------------------------------------------------------------------------
def _device_flags():
    try:
        kind = jax.devices()[0].device_kind.lower()
    except Exception:
        kind = ""
    has_bf16_vpu = ("v6" in kind) or ("v7" in kind) or ("7x" in kind)
    is_v7 = ("v7" in kind) or ("7x" in kind)
    return has_bf16_vpu, is_v7


def _choose_tm(n, is_v7):
    """Big row tiles amortize the ~0.35us per-grid-step overhead.  Keep >=4
    row tiles so the megacore (2 TCs) stays balanced, and cap tm lower on v7x
    (64 MiB physical VMEM vs 128 MiB on v5e/v6e)."""
    cap = 2048 if is_v7 else 4096
    tm = 128
    for cand in (256, 512, 1024, 2048, 4096):
        if cand <= cap and n >= 4 * cand:
            tm = cand
    return tm


# ----------------------------------------------------------------------------
# Pallas kernel: 6-layer MLP (bf16 MXU, f32 acc) + fused 4-branch ensemble sum
#   grid = (row_tiles, 4); branch axis is the reduction ("arbitrary") axis.
# ----------------------------------------------------------------------------
def _fused_mlp_kernel(n_layers, out_dim, x_ref, a_ref, *refs):
    o_ref, acc_ref = refs[-2], refs[-1]
    params = refs[:-2]
    k = pl.program_id(1)

    @pl.when(k == 0)
    def _():
        acc_ref[...] = jnp.zeros_like(acc_ref)

    h = x_ref[...]                                   # bf16 (tm, in_dim)
    hf = None
    for li in range(n_layers):
        w = params[2 * li][...]                      # bf16 (in, out)
        b = params[2 * li + 1][...]                  # bf16 (v6e/v7x) or f32 (v5e); last: f32
        hf = jnp.dot(h, w, preferred_element_type=jnp.float32)
        if li < n_layers - 1:
            # bias-add + ReLU in the per-generation elementwise dtype; next
            # matmul operand is always bf16.
            h = jnp.maximum(hf.astype(b.dtype) + b, 0).astype(jnp.bfloat16)
        else:
            hf = hf + b                              # final layer stays f32

    # Fused local-ensemble reduction: accumulate pred * normalized area weight.
    acc_ref[...] += hf * a_ref[...]                  # (tm, out_pad) * (tm, 1)

    @pl.when(k == pl.num_programs(1) - 1)
    def _():
        # Lane-thin single store per row tile (real columns only).
        o_ref[...] = acc_ref[...][:, :out_dim].astype(o_ref.dtype)


def fused_mlp_ensemble(x4, wgt4, params, *, tm=None):
    """x4:   (4, N, in_dim) bf16 MLP inputs for the 4 local-ensemble branches.
    wgt4: (4, N, 1) f32 normalized area weights.
    params: flat [w1, b1, ..., wL, bL] f32 with w_i (in, out), b_i (1, out).
    Returns (N, out_dim) f32 = sum_k MLP(x4[k]) * wgt4[k]."""
    _, N, in_dim = x4.shape
    n_layers = len(params) // 2
    ws = [params[2 * i] for i in range(n_layers)]
    bs = [params[2 * i + 1] for i in range(n_layers)]
    out_dim = ws[-1].shape[-1]
    out_pad = pl.cdiv(out_dim, 128) * 128            # lane-dense MXU output for last layer
    if out_pad != out_dim:
        ws[-1] = jnp.pad(ws[-1], ((0, 0), (0, out_pad - out_dim)))
        bs[-1] = jnp.pad(bs[-1], ((0, 0), (0, out_pad - out_dim)))

    has_bf16_vpu, is_v7 = _device_flags()
    elem_dtype = jnp.bfloat16 if has_bf16_vpu else jnp.float32

    kparams = []
    for li, (w, b) in enumerate(zip(ws, bs)):
        kparams.append(w.astype(jnp.bfloat16))
        kparams.append(b.astype(jnp.float32 if li == n_layers - 1 else elem_dtype))

    if tm is None:
        tm = _choose_tm(N, is_v7)
    pad = (-N) % tm
    if pad:
        x4 = jnp.pad(x4, ((0, 0), (0, pad), (0, 0)))
        wgt4 = jnp.pad(wgt4, ((0, 0), (0, pad), (0, 0)))
    Np = N + pad
    nblk = Np // tm

    x2 = x4.reshape(4 * Np, in_dim)
    w2 = wgt4.reshape(4 * Np, 1)

    in_specs = [
        pl.BlockSpec((tm, in_dim), lambda i, k: (k * nblk + i, 0)),
        pl.BlockSpec((tm, 1), lambda i, k: (k * nblk + i, 0)),
    ]
    for p in kparams:
        # Constant index_map: ~0.6 MiB of bf16 params fetched once and kept
        # resident in VMEM across every grid step.  (Single-buffering via
        # pl.Buffered(1) intentionally omitted for robustness; the extra
        # pipeline copy is ~1 MiB of a >=32 MiB budget.)
        in_specs.append(pl.BlockSpec(p.shape, lambda i, k: (0, 0)))

    # VMEM budget estimate for the chosen tile (blocks are double-buffered).
    param_bytes = sum(int(p.size) * p.dtype.itemsize for p in kparams)
    vmem_bytes = (2 * tm * in_dim * 2            # x blocks (bf16)
                  + 2 * tm * 4                   # area-weight blocks
                  + 2 * param_bytes              # resident params (+ pipeline copy)
                  + tm * out_pad * 4             # accumulator scratch
                  + 2 * tm * out_dim * 4         # output blocks
                  + 4 * tm * 256 * 4)            # activation headroom
    vmem_limit = min(max(vmem_bytes + (8 << 20), 32 << 20), 48 << 20)

    kernel = functools.partial(_fused_mlp_kernel, n_layers, out_dim)
    out = pl.pallas_call(
        kernel,
        out_shape=jax.ShapeDtypeStruct((Np, out_dim), jnp.float32),
        grid=(nblk, 4),
        in_specs=in_specs,
        out_specs=pl.BlockSpec((tm, out_dim), lambda i, k: (i, 0)),
        scratch_shapes=[pltpu.VMEM((tm, out_pad), jnp.float32)],
        compiler_params=pltpu.CompilerParams(
            dimension_semantics=("parallel", "arbitrary"),
            vmem_limit_bytes=vmem_limit),
    )(x2, w2, *kparams)
    return out[:N]


# ----------------------------------------------------------------------------
# Glue (plain JAX): nearest grid_sample index math + direct 9-tap gather
# (replaces the 9x-materializing unfold + vmapped fancy-index gather)
# ----------------------------------------------------------------------------
def nearest_indices(coord_, H, W):
    """PyTorch grid_sample(mode='nearest', align_corners=False) source idx.
    coord_[..., 0] is the h-coordinate, coord_[..., 1] the w-coordinate
    (the .flip(-1) in the PyTorch code maps them to grid (x=w, y=h)).
    NOTE: jnp.round and PyTorch's nearbyint are both ties-to-even."""
    gy = coord_[..., 0]
    gx = coord_[..., 1]
    iy = jnp.clip(jnp.round(((gy + 1.0) * H - 1.0) / 2.0).astype(jnp.int32), 0, H - 1)
    ix = jnp.clip(jnp.round(((gx + 1.0) * W - 1.0) / 2.0).astype(jnp.int32), 0, W - 1)
    return iy, ix


# kernel-tap offsets in F.unfold order: tap k = ki*3 + kj, offset (ki-1, kj-1)
_DI = jnp.array([-1, -1, -1, 0, 0, 0, 1, 1, 1], jnp.int32)
_DJ = jnp.array([-1, 0, 1, -1, 0, 1, -1, 0, 1], jnp.int32)


def gather_unfold_taps(feat_hwc, iy, ix, H, W):
    """feat_hwc: (B, H*W, C); iy/ix: (B, Q) int32.
    Returns (B, Q, C*9) matching F.unfold(feat, 3, padding=1) channel ordering
    (index = c*9 + tap), with zero padding outside the image."""
    B, HW, C = feat_hwc.shape
    Q = iy.shape[1]
    ny = iy[..., None] + _DI                          # (B, Q, 9)
    nx = ix[..., None] + _DJ
    valid = ((ny >= 0) & (ny < H) & (nx >= 0) & (nx < W))
    lin = jnp.clip(ny, 0, H - 1) * W + jnp.clip(nx, 0, W - 1)   # (B, Q, 9)
    t = jnp.take_along_axis(feat_hwc, lin.reshape(B, Q * 9)[..., None], axis=1)
    t = t.reshape(B, Q, 9, C) * valid[..., None].astype(feat_hwc.dtype)
    # unfold order is channel-major, tap-minor -> (B, Q, C, 9) -> (B, Q, C*9)
    return jnp.transpose(t, (0, 1, 3, 2)).reshape(B, Q, C * 9)


# ----------------------------------------------------------------------------
# LIIF forward (local_ensemble=True, feat_unfold=True, cell_decode=True)
# ----------------------------------------------------------------------------
@jax.jit
def liif_forward(feat, coord, cell, params):
    B, C, H, W = feat.shape
    Q = coord.shape[1]
    out_dim = params[-1].shape[-1]

    # One layout transpose (to bf16) instead of a 9x unfolded HBM tensor.
    feat_hwc = jnp.transpose(feat, (0, 2, 3, 1)).reshape(B, H * W, C)
    feat_hwc = feat_hwc.astype(jnp.bfloat16)

    rx = 2.0 / H / 2.0
    ry = 2.0 / W / 2.0
    eps_shift = 1e-6

    inputs = []
    areas = []
    for vx in (-1, 1):
        for vy in (-1, 1):
            shift = jnp.array([vx * rx + eps_shift, vy * ry + eps_shift],
                              jnp.float32)
            coord_ = jnp.clip(coord + shift, -1.0 + 1e-6, 1.0 - 1e-6)

            iy, ix = nearest_indices(coord_, H, W)
            q_feat = gather_unfold_taps(feat_hwc, iy, ix, H, W)   # (B, Q, C*9) bf16

            # feat_coord at the sampled cell (make_coord values), f32.
            qc_y = -1.0 + (2.0 * iy.astype(jnp.float32) + 1.0) / H
            qc_x = -1.0 + (2.0 * ix.astype(jnp.float32) + 1.0) / W
            q_coord = jnp.stack([qc_y, qc_x], axis=-1)            # (B, Q, 2)

            rel_coord = (coord - q_coord) * jnp.array([H, W], jnp.float32)
            rel_cell = cell * jnp.array([H, W], jnp.float32)

            # MLP input built directly in bf16 (halves glue HBM traffic);
            # areas stay f32 for the ensemble weights.
            inp = jnp.concatenate([q_feat,
                                   rel_coord.astype(jnp.bfloat16),
                                   rel_cell.astype(jnp.bfloat16)], axis=-1)
            inputs.append(inp)
            areas.append(jnp.abs(rel_coord[..., 0] * rel_coord[..., 1]) + 1e-9)

    in_dim = C * 9 + 4
    x4 = jnp.stack(inputs, axis=0).reshape(4, B * Q, in_dim)      # bf16

    tot_area = areas[0] + areas[1] + areas[2] + areas[3]
    # local_ensemble swap: areas[0]<->areas[3], areas[1]<->areas[2]
    areas = [areas[3], areas[2], areas[1], areas[0]]
    wgt4 = jnp.stack([a / tot_area for a in areas], axis=0)       # (4, B, Q) f32
    wgt4 = wgt4.reshape(4, B * Q, 1).astype(jnp.float32)

    pred = fused_mlp_ensemble(x4, wgt4, params)                   # (B*Q, out_dim)
    return pred.reshape(B, Q, out_dim)


# ----------------------------------------------------------------------------
# Deterministic parameter init (PyTorch nn.Linear default: U(-1/sqrt(fan_in),..))
# ----------------------------------------------------------------------------
def init_params(key, in_dim, hidden_list, out_dim):
    dims = [in_dim] + list(hidden_list) + [out_dim]
    params = []
    for li in range(len(dims) - 1):
        fan_in, fan_out = dims[li], dims[li + 1]
        key, kw, kb = jax.random.split(key, 3)
        bound = 1.0 / (fan_in ** 0.5)
        w = jax.random.uniform(kw, (fan_in, fan_out), jnp.float32, -bound, bound)
        b = jax.random.uniform(kb, (1, fan_out), jnp.float32, -bound, bound)
        params += [w, b]
    return params


if __name__ == "__main__":
    key = jax.random.PRNGKey(0)
    B, C, H, W, Q = 2, 4, 16, 16, 64

    k_feat, k_coord, k_cell, k_w = jax.random.split(key, 4)
    feat = jax.random.normal(k_feat, (B, C, H, W), jnp.float32)
    coord = jax.random.uniform(k_coord, (B, Q, 2), jnp.float32, -1.0, 1.0)
    # cell sizes ~ 2/output_resolution (positive, small)
    cell = (2.0 / 32.0) * (1.0 + 0.1 * jax.random.uniform(k_cell, (B, Q, 2),
                                                          jnp.float32))

    params = init_params(k_w, in_dim=C * 9 + 2 + 2,
                         hidden_list=[256, 256, 256, 256, 256], out_dim=C)

    out = liif_forward(feat, coord, cell, params)
    out = jax.block_until_ready(out)
    assert out.shape == (B, Q, C) and out.dtype == jnp.float32
    assert bool(jnp.all(jnp.isfinite(out)))
    print("KERNEL_OK")
</pallas_src>

<mosaic_0001>
module attributes {stable_mosaic.version = 11 : i64} {
  func.func @_fused_mlp_kernel(%arg0: i32, %arg1: i32, %arg2: memref<128x40xbf16, #tpu.memory_space<vmem>>, %arg3: memref<128x1xf32, #tpu.memory_space<vmem>>, %arg4: memref<40x256xbf16, #tpu.memory_space<vmem>>, %arg5: memref<1x256xf32, #tpu.memory_space<vmem>>, %arg6: memref<256x256xbf16, #tpu.memory_space<vmem>>, %arg7: memref<1x256xf32, #tpu.memory_space<vmem>>, %arg8: memref<256x256xbf16, #tpu.memory_space<vmem>>, %arg9: memref<1x256xf32, #tpu.memory_space<vmem>>, %arg10: memref<256x256xbf16, #tpu.memory_space<vmem>>, %arg11: memref<1x256xf32, #tpu.memory_space<vmem>>, %arg12: memref<256x256xbf16, #tpu.memory_space<vmem>>, %arg13: memref<1x256xf32, #tpu.memory_space<vmem>>, %arg14: memref<256x128xbf16, #tpu.memory_space<vmem>>, %arg15: memref<1x128xf32, #tpu.memory_space<vmem>>, %arg16: memref<128x4xf32, #tpu.memory_space<vmem>>, %arg17: memref<128x128xf32, #tpu.memory_space<vmem>>) attributes {dimension_semantics = [#tpu.dimension_semantics<parallel>, #tpu.dimension_semantics<arbitrary>], iteration_bounds = array<i64: 1, 4>, scalar_prefetch = 0 : i64, scratch_operands = 1 : i64, tpu.core_type = #tpu.core_type<tc>, window_params = [{transform_indices = @transform_0, window_bounds = array<i64: 128, 40>}, {transform_indices = @transform_1, window_bounds = array<i64: 128, 1>}, {pipeline_mode = #tpu.pipeline_mode<synchronous>, transform_indices = @transform_2, window_bounds = array<i64: 40, 256>}, {pipeline_mode = #tpu.pipeline_mode<synchronous>, transform_indices = @transform_3, window_bounds = array<i64: 1, 256>}, {pipeline_mode = #tpu.pipeline_mode<synchronous>, transform_indices = @transform_4, window_bounds = array<i64: 256, 256>}, {pipeline_mode = #tpu.pipeline_mode<synchronous>, transform_indices = @transform_5, window_bounds = array<i64: 1, 256>}, {pipeline_mode = #tpu.pipeline_mode<synchronous>, transform_indices = @transform_6, window_bounds = array<i64: 256, 256>}, {pipeline_mode = #tpu.pipeline_mode<synchronous>, transform_indices = @transform_7, window_bounds = array<i64: 1, 256>}, {pipeline_mode = #tpu.pipeline_mode<synchronous>, transform_indices = @transform_8, window_bounds = array<i64: 256, 256>}, {pipeline_mode = #tpu.pipeline_mode<synchronous>, transform_indices = @transform_9, window_bounds = array<i64: 1, 256>}, {pipeline_mode = #tpu.pipeline_mode<synchronous>, transform_indices = @transform_10, window_bounds = array<i64: 256, 256>}, {pipeline_mode = #tpu.pipeline_mode<synchronous>, transform_indices = @transform_11, window_bounds = array<i64: 1, 256>}, {pipeline_mode = #tpu.pipeline_mode<synchronous>, transform_indices = @transform_12, window_bounds = array<i64: 256, 128>}, {pipeline_mode = #tpu.pipeline_mode<synchronous>, transform_indices = @transform_13, window_bounds = array<i64: 1, 128>}, {transform_indices = @transform_14, window_bounds = array<i64: 128, 4>}]} {
    %c0_i32 = arith.constant 0 : i32
    %0 = arith.cmpi eq, %arg1, %c0_i32 : i32
    %1 = arith.extui %0 : i1 to i32
    %c0_i32_0 = arith.constant 0 : i32
    %2 = arith.cmpi ne, %1, %c0_i32_0 : i32
    scf.if %2 {
      %cst_43 = arith.constant 0.000000e+00 : f32
      %58 = vector.broadcast %cst_43 : f32 to vector<128x128xf32>
      %c0_44 = arith.constant 0 : index
      %c0_45 = arith.constant 0 : index
      %59 = vector.load %arg17[%c0_44, %c0_45] : memref<128x128xf32, #tpu.memory_space<vmem>>, vector<128x128xf32>
      tpu.vector_store %arg17[%c0_44, %c0_45], %58 {strides = array<i32>} : memref<128x128xf32, #tpu.memory_space<vmem>>, vector<128x128xf32>,
    } else {
    }
    %c0 = arith.constant 0 : index
    %c0_1 = arith.constant 0 : index
    %3 = vector.load %arg2[%c0, %c0_1] : memref<128x40xbf16, #tpu.memory_space<vmem>>, vector<128x40xbf16>
    %c0_2 = arith.constant 0 : index
    %c0_3 = arith.constant 0 : index
    %4 = vector.load %arg4[%c0_2, %c0_3] : memref<40x256xbf16, #tpu.memory_space<vmem>>, vector<40x256xbf16>
    %c0_4 = arith.constant 0 : index
    %c0_5 = arith.constant 0 : index
    %5 = vector.load %arg5[%c0_4, %c0_5] : memref<1x256xf32, #tpu.memory_space<vmem>>, vector<1x256xf32>
    %cst = arith.constant dense<0.000000e+00> : vector<128x256xf32>
    %6 = tpu.matmul %3, %4, %cst {dimension_numbers = #tpu.dot_dimension_numbers<[1], [0], [0], [1], [0, 0, 1, 1], [], []>} : vector<128x40xbf16>, vector<40x256xbf16>, vector<128x256xf32> -> vector<128x256xf32>
    %7 = vector.broadcast %5 : vector<1x256xf32> to vector<128x256xf32>
    %8 = arith.addf %6, %7 : vector<128x256xf32>
    %cst_6 = arith.constant 0.000000e+00 : f32
    %9 = vector.broadcast %cst_6 : f32 to vector<128x256xf32>
    %10 = arith.maximumf %8, %9 : vector<128x256xf32>
    %11 = arith.truncf %10 : vector<128x256xf32> to vector<128x256xbf16>
    %c0_7 = arith.constant 0 : index
    %c0_8 = arith.constant 0 : index
    %12 = vector.load %arg6[%c0_7, %c0_8] : memref<256x256xbf16, #tpu.memory_space<vmem>>, vector<256x256xbf16>
    %c0_9 = arith.constant 0 : index
    %c0_10 = arith.constant 0 : index
    %13 = vector.load %arg7[%c0_9, %c0_10] : memref<1x256xf32, #tpu.memory_space<vmem>>, vector<1x256xf32>
    %cst_11 = arith.constant dense<0.000000e+00> : vector<128x256xf32>
    %14 = tpu.matmul %11, %12, %cst_11 {dimension_numbers = #tpu.dot_dimension_numbers<[1], [0], [0], [1], [0, 0, 1, 1], [], []>} : vector<128x256xbf16>, vector<256x256xbf16>, vector<128x256xf32> -> vector<128x256xf32>
    %15 = vector.broadcast %13 : vector<1x256xf32> to vector<128x256xf32>
    %16 = arith.addf %14, %15 : vector<128x256xf32>
    %cst_12 = arith.constant 0.000000e+00 : f32
    %17 = vector.broadcast %cst_12 : f32 to vector<128x256xf32>
    %18 = arith.maximumf %16, %17 : vector<128x256xf32>
    %19 = arith.truncf %18 : vector<128x256xf32> to vector<128x256xbf16>
    %c0_13 = arith.constant 0 : index
    %c0_14 = arith.constant 0 : index
    %20 = vector.load %arg8[%c0_13, %c0_14] : memref<256x256xbf16, #tpu.memory_space<vmem>>, vector<256x256xbf16>
    %c0_15 = arith.constant 0 : index
    %c0_16 = arith.constant 0 : index
    %21 = vector.load %arg9[%c0_15, %c0_16] : memref<1x256xf32, #tpu.memory_space<vmem>>, vector<1x256xf32>
    %cst_17 = arith.constant dense<0.000000e+00> : vector<128x256xf32>
    %22 = tpu.matmul %19, %20, %cst_17 {dimension_numbers = #tpu.dot_dimension_numbers<[1], [0], [0], [1], [0, 0, 1, 1], [], []>} : vector<128x256xbf16>, vector<256x256xbf16>, vector<128x256xf32> -> vector<128x256xf32>
    %23 = vector.broadcast %21 : vector<1x256xf32> to vector<128x256xf32>
    %24 = arith.addf %22, %23 : vector<128x256xf32>
    %cst_18 = arith.constant 0.000000e+00 : f32
    %25 = vector.broadcast %cst_18 : f32 to vector<128x256xf32>
    %26 = arith.maximumf %24, %25 : vector<128x256xf32>
    %27 = arith.truncf %26 : vector<128x256xf32> to vector<128x256xbf16>
    %c0_19 = arith.constant 0 : index
    %c0_20 = arith.constant 0 : index
    %28 = vector.load %arg10[%c0_19, %c0_20] : memref<256x256xbf16, #tpu.memory_space<vmem>>, vector<256x256xbf16>
    %c0_21 = arith.constant 0 : index
    %c0_22 = arith.constant 0 : index
    %29 = vector.load %arg11[%c0_21, %c0_22] : memref<1x256xf32, #tpu.memory_space<vmem>>, vector<1x256xf32>
    %cst_23 = arith.constant dense<0.000000e+00> : vector<128x256xf32>
    %30 = tpu.matmul %27, %28, %cst_23 {dimension_numbers = #tpu.dot_dimension_numbers<[1], [0], [0], [1], [0, 0, 1, 1], [], []>} : vector<128x256xbf16>, vector<256x256xbf16>, vector<128x256xf32> -> vector<128x256xf32>
    %31 = vector.broadcast %29 : vector<1x256xf32> to vector<128x256xf32>
    %32 = arith.addf %30, %31 : vector<128x256xf32>
    %cst_24 = arith.constant 0.000000e+00 : f32
    %33 = vector.broadcast %cst_24 : f32 to vector<128x256xf32>
    %34 = arith.maximumf %32, %33 : vector<128x256xf32>
    %35 = arith.truncf %34 : vector<128x256xf32> to vector<128x256xbf16>
    %c0_25 = arith.constant 0 : index
    %c0_26 = arith.constant 0 : index
    %36 = vector.load %arg12[%c0_25, %c0_26] : memref<256x256xbf16, #tpu.memory_space<vmem>>, vector<256x256xbf16>
    %c0_27 = arith.constant 0 : index
    %c0_28 = arith.constant 0 : index
    %37 = vector.load %arg13[%c0_27, %c0_28] : memref<1x256xf32, #tpu.memory_space<vmem>>, vector<1x256xf32>
    %cst_29 = arith.constant dense<0.000000e+00> : vector<128x256xf32>
    %38 = tpu.matmul %35, %36, %cst_29 {dimension_numbers = #tpu.dot_dimension_numbers<[1], [0], [0], [1], [0, 0, 1, 1], [], []>} : vector<128x256xbf16>, vector<256x256xbf16>, vector<128x256xf32> -> vector<128x256xf32>
    %39 = vector.broadcast %37 : vector<1x256xf32> to vector<128x256xf32>
    %40 = arith.addf %38, %39 : vector<128x256xf32>
    %cst_30 = arith.constant 0.000000e+00 : f32
    %41 = vector.broadcast %cst_30 : f32 to vector<128x256xf32>
    %42 = arith.maximumf %40, %41 : vector<128x256xf32>
    %43 = arith.truncf %42 : vector<128x256xf32> to vector<128x256xbf16>
    %c0_31 = arith.constant 0 : index
    %c0_32 = arith.constant 0 : index
    %44 = vector.load %arg14[%c0_31, %c0_32] : memref<256x128xbf16, #tpu.memory_space<vmem>>, vector<256x128xbf16>
    %c0_33 = arith.constant 0 : index
    %c0_34 = arith.constant 0 : index
    %45 = vector.load %arg15[%c0_33, %c0_34] : memref<1x128xf32, #tpu.memory_space<vmem>>, vector<1x128xf32>
    %cst_35 = arith.constant dense<0.000000e+00> : vector<128x128xf32>
    %46 = tpu.matmul %43, %44, %cst_35 {dimension_numbers = #tpu.dot_dimension_numbers<[1], [0], [0], [1], [0, 0, 1, 1], [], []>} : vector<128x256xbf16>, vector<256x128xbf16>, vector<128x128xf32> -> vector<128x128xf32>
    %47 = vector.broadcast %45 : vector<1x128xf32> to vector<128x128xf32>
    %48 = arith.addf %46, %47 : vector<128x128xf32>
    %c0_36 = arith.constant 0 : index
    %c0_37 = arith.constant 0 : index
    %49 = vector.load %arg17[%c0_36, %c0_37] : memref<128x128xf32, #tpu.memory_space<vmem>>, vector<128x128xf32>
    %c0_38 = arith.constant 0 : index
    %c0_39 = arith.constant 0 : index
    %50 = vector.load %arg3[%c0_38, %c0_39] : memref<128x1xf32, #tpu.memory_space<vmem>>, vector<128x1xf32>
    %51 = vector.broadcast %50 : vector<128x1xf32> to vector<128x128xf32>
    %52 = arith.mulf %48, %51 : vector<128x128xf32>
    %53 = arith.addf %49, %52 : vector<128x128xf32>
    %c0_40 = arith.constant 0 : index
    %c0_41 = arith.constant 0 : index
    %54 = vector.load %arg17[%c0_40, %c0_41] : memref<128x128xf32, #tpu.memory_space<vmem>>, vector<128x128xf32>
    tpu.vector_store %arg17[%c0_40, %c0_41], %53 {strides = array<i32>} : memref<128x128xf32, #tpu.memory_space<vmem>>, vector<128x128xf32>,
    %c3_i32 = arith.constant 3 : i32
    %55 = arith.cmpi eq, %arg1, %c3_i32 : i32
    %56 = arith.extui %55 : i1 to i32
    %c0_i32_42 = arith.constant 0 : i32
    %57 = arith.cmpi ne, %56, %c0_i32_42 : i32
    scf.if %57 {
      %c0_43 = arith.constant 0 : index
      %c0_44 = arith.constant 0 : index
      %58 = vector.load %arg17[%c0_43, %c0_44] : memref<128x128xf32, #tpu.memory_space<vmem>>, vector<128x128xf32>
      %59 = vector.extract_strided_slice %58 {offsets = [0, 0], sizes = [128, 4], strides = [1, 1]} : vector<128x128xf32> to vector<128x4xf32>
      %c0_45 = arith.constant 0 : index
      %c0_46 = arith.constant 0 : index
      %60 = vector.load %arg16[%c0_45, %c0_46] : memref<128x4xf32, #tpu.memory_space<vmem>>, vector<128x4xf32>
      tpu.vector_store %arg16[%c0_45, %c0_46], %59 {strides = array<i32>} : memref<128x4xf32, #tpu.memory_space<vmem>>, vector<128x4xf32>,
    } else {
    }
    return
  }
  func.func @transform_0(%arg0: i32, %arg1: i32) -> (i32, i32) {
    %c1_i32 = arith.constant 1 : i32
    %0 = arith.muli %arg1, %c1_i32 : i32
    %1 = arith.addi %0, %arg0 : i32
    %c0_i32 = arith.constant 0 : i32
    %c0_i32_0 = arith.constant 0 : i32
    return %1, %c0_i32 : i32, i32
  }
  func.func @transform_1(%arg0: i32, %arg1: i32) -> (i32, i32) {
    %c1_i32 = arith.constant 1 : i32
    %0 = arith.muli %arg1, %c1_i32 : i32
    %1 = arith.addi %0, %arg0 : i32
    %c0_i32 = arith.constant 0 : i32
    %c0_i32_0 = arith.constant 0 : i32
    return %1, %c0_i32 : i32, i32
  }
  func.func @transform_2(%arg0: i32, %arg1: i32) -> (i32, i32) {
    %c0_i32 = arith.constant 0 : i32
    %c0_i32_0 = arith.constant 0 : i32
    %c0_i32_1 = arith.constant 0 : i32
    return %c0_i32, %c0_i32_0 : i32, i32
  }
  func.func @transform_3(%arg0: i32, %arg1: i32) -> (i32, i32) {
    %c0_i32 = arith.constant 0 : i32
    %c0_i32_0 = arith.constant 0 : i32
    %c0_i32_1 = arith.constant 0 : i32
    return %c0_i32, %c0_i32_0 : i32, i32
  }
  func.func @transform_4(%arg0: i32, %arg1: i32) -> (i32, i32) {
    %c0_i32 = arith.constant 0 : i32
    %c0_i32_0 = arith.constant 0 : i32
    %c0_i32_1 = arith.constant 0 : i32
    return %c0_i32, %c0_i32_0 : i32, i32
  }
  func.func @transform_5(%arg0: i32, %arg1: i32) -> (i32, i32) {
    %c0_i32 = arith.constant 0 : i32
    %c0_i32_0 = arith.constant 0 : i32
    %c0_i32_1 = arith.constant 0 : i32
    return %c0_i32, %c0_i32_0 : i32, i32
  }
  func.func @transform_6(%arg0: i32, %arg1: i32) -> (i32, i32) {
    %c0_i32 = arith.constant 0 : i32
    %c0_i32_0 = arith.constant 0 : i32
    %c0_i32_1 = arith.constant 0 : i32
    return %c0_i32, %c0_i32_0 : i32, i32
  }
  func.func @transform_7(%arg0: i32, %arg1: i32) -> (i32, i32) {
    %c0_i32 = arith.constant 0 : i32
    %c0_i32_0 = arith.constant 0 : i32
    %c0_i32_1 = arith.constant 0 : i32
    return %c0_i32, %c0_i32_0 : i32, i32
  }
  func.func @transform_8(%arg0: i32, %arg1: i32) -> (i32, i32) {
    %c0_i32 = arith.constant 0 : i32
    %c0_i32_0 = arith.constant 0 : i32
    %c0_i32_1 = arith.constant 0 : i32
    return %c0_i32, %c0_i32_0 : i32, i32
  }
  func.func @transform_9(%arg0: i32, %arg1: i32) -> (i32, i32) {
    %c0_i32 = arith.constant 0 : i32
    %c0_i32_0 = arith.constant 0 : i32
    %c0_i32_1 = arith.constant 0 : i32
    return %c0_i32, %c0_i32_0 : i32, i32
  }
  func.func @transform_10(%arg0: i32, %arg1: i32) -> (i32, i32) {
    %c0_i32 = arith.constant 0 : i32
    %c0_i32_0 = arith.constant 0 : i32
    %c0_i32_1 = arith.constant 0 : i32
    return %c0_i32, %c0_i32_0 : i32, i32
  }
  func.func @transform_11(%arg0: i32, %arg1: i32) -> (i32, i32) {
    %c0_i32 = arith.constant 0 : i32
    %c0_i32_0 = arith.constant 0 : i32
    %c0_i32_1 = arith.constant 0 : i32
    return %c0_i32, %c0_i32_0 : i32, i32
  }
  func.func @transform_12(%arg0: i32, %arg1: i32) -> (i32, i32) {
    %c0_i32 = arith.constant 0 : i32
    %c0_i32_0 = arith.constant 0 : i32
    %c0_i32_1 = arith.constant 0 : i32
    return %c0_i32, %c0_i32_0 : i32, i32
  }
  func.func @transform_13(%arg0: i32, %arg1: i32) -> (i32, i32) {
    %c0_i32 = arith.constant 0 : i32
    %c0_i32_0 = arith.constant 0 : i32
    %c0_i32_1 = arith.constant 0 : i32
    return %c0_i32, %c0_i32_0 : i32, i32
  }
  func.func @transform_14(%arg0: i32, %arg1: i32) -> (i32, i32) {
    %c0_i32 = arith.constant 0 : i32
    %c0_i32_0 = arith.constant 0 : i32
    return %arg0, %c0_i32 : i32, i32
  }
}

</mosaic_0001>

<llo_original>
// kernel: liif_forward.1
$region0: #{liif_forward.1}
  #allocation0 [shape = 'u32[]', space=smem, size = 0x4, offset = 0x4, fixed_abs, tag = 'smem constant byte address 0x4 - core index']
  #allocation1 [shape = 'u32[72,128]{1,0:T(1,128)}', space=vmem, size = 0x9000, scoped, tag = 'internal scratch']
  #allocation2 [shape = 'f32[128,128]{1,0:T(8,128)}', space=vmem, size = 0x10000, scoped, tag = 'scratch operand']
  %s0 = inlined_call_operand.vmem [shape: bf16[512,40], index: 0, kind: input, shape index: {}]
  %s1 = inlined_call_operand.vmem [shape: f32[512,1], index: 1, kind: input, shape index: {}]
  %s2 = inlined_call_operand.vmem [shape: bf16[40,256], index: 2, kind: input, shape index: {}]
  %s3 = inlined_call_operand.vmem [shape: f32[1,256], index: 3, kind: input, shape index: {}]
  %s4 = inlined_call_operand.vmem [shape: bf16[256,256], index: 4, kind: input, shape index: {}]
  %s5 = inlined_call_operand.vmem [shape: f32[1,256], index: 5, kind: input, shape index: {}]
  %s6 = inlined_call_operand.vmem [shape: bf16[256,256], index: 6, kind: input, shape index: {}]
  %s7 = inlined_call_operand.vmem [shape: f32[1,256], index: 7, kind: input, shape index: {}]
  %s8 = inlined_call_operand.vmem [shape: bf16[256,256], index: 8, kind: input, shape index: {}]
  %s9 = inlined_call_operand.vmem [shape: f32[1,256], index: 9, kind: input, shape index: {}]
  %s10 = inlined_call_operand.vmem [shape: bf16[256,256], index: 10, kind: input, shape index: {}]
  %s11 = inlined_call_operand.vmem [shape: f32[1,256], index: 11, kind: input, shape index: {}]
  %s12 = inlined_call_operand.vmem [shape: bf16[256,128], index: 12, kind: input, shape index: {}]
  %s13 = inlined_call_operand.vmem [shape: f32[1,128], index: 13, kind: input, shape index: {}]
  %s14 = inlined_call_operand.vmem [shape: f32[128,4], index: 14, kind: output, shape index: {}]
  %s15 = sld [smem:[#allocation0]]
  $region97: #{liif_forward.1} parent=0
    _
  %s17 = ssub.s32 1, %s15
  %s18 = scalar_select 0, %s17, %s15
  loop: start=0, step=1, limit=6
  $region2: #{liif_forward.1} parent=0 // loop_pre_header
    _
  $region3: #{liif_forward.1} parent=0 // loop_header
    %s20 = sphi 0, %s24
    %p21 = scmp.ge.s32.totalorder %s20, 6
    %s27 = sphi 0, %s39
    %s28 = sphi 0, %s35
    %s29 = sphi 0, %s27
    %s30 = sphi 0, %s28
    %s31 = sphi 0, %s29
    %s32 = sphi 0, %s30
    %s44 = sphi 0, %s46
    %s47 = sphi 0, %s44
    %s48 = sphi 0, %s47
    %s64 = sphi 0, %s48
    %s72 = sphi 0, %s74
    %s75 = sphi 0, %s72
    %s76 = sphi 0, %s75
    %s92 = sphi 0, %s76
    %s96 = sphi 0, %s96
    %s98 = sphi 0, %s96
    %s99 = sphi 0, %s98
    %s113 = sphi 0, %s99
    %s117 = sphi 0, %s117
    %s119 = sphi 0, %s117
    %s120 = sphi 0, %s119
    %s134 = sphi 0, %s120
    %s138 = sphi 0, %s138
    %s140 = sphi 0, %s138
    %s141 = sphi 0, %s140
    %s155 = sphi 0, %s141
    %s159 = sphi 0, %s159
    %s161 = sphi 0, %s159
    %s162 = sphi 0, %s161
    %s176 = sphi 0, %s162
    %s180 = sphi 0, %s180
    %s182 = sphi 0, %s180
    %s183 = sphi 0, %s182
    %s197 = sphi 0, %s183
    %s201 = sphi 0, %s201
    %s203 = sphi 0, %s201
    %s204 = sphi 0, %s203
    %s218 = sphi 0, %s204
    %s222 = sphi 0, %s222
    %s224 = sphi 0, %s222
    %s225 = sphi 0, %s224
    %s239 = sphi 0, %s225
    %s243 = sphi 0, %s243
    %s245 = sphi 0, %s243
    %s246 = sphi 0, %s245
    %s260 = sphi 0, %s246
    %s264 = sphi 0, %s264
    %s266 = sphi 0, %s264
    %s267 = sphi 0, %s266
    %s281 = sphi 0, %s267
    %s285 = sphi 0, %s285
    %s287 = sphi 0, %s285
    %s288 = sphi 0, %s287
    %s302 = sphi 0, %s288
    %s306 = sphi 0, %s306
    %s308 = sphi 0, %s306
    %s309 = sphi 0, %s308
    %s323 = sphi 0, %s309
    %s327 = sphi 0, %s327
    %s329 = sphi 0, %s327
    %s330 = sphi 0, %s329
    %s344 = sphi 0, %s330
    %s350 = sphi 0, %s352
    %s353 = sphi 0, %s350
    %s354 = sphi 0, %s353
    %s370 = sphi 0, %s354
  $region4: #{liif_forward.1} parent=0 // loop_header_branch
    %23 = sbr.rel (%p21) target = $region8
  $region5: #{liif_forward.1} parent=0 // loop_body
    %s25 = ssub.s32 %s20, 1
    %s26 = ssub.s32 %s20, 2
    %s33 = sadd.s32 1, %s28
    %p34 = scmp.ge.s32.totalorder %s33, 4
    %s35 = scalar_select %p34, 0, %s33
    %s36 = sadd.s32 1, %s27
    %s37 = scalar_select %p34, %s36, %s27
    %p38 = scmp.ge.s32.totalorder %s37, 1
    %s39 = scalar_select %p38, 0, %s37
    %s40 = sadd.s32 %s28, %s27
    %s41 = sadd.s32 %s35, %s39
    %s42 = ssub.s32 %s40, %s41
    %p43 = scmp.eq.s32.totalorder %s42, 0
    %s45 = sadd.s32 %s44, 1
    %s46 = scalar_select %p43, %s44, %s45
    %p49 = pneg %p43
    %p50 = scmp.eq.s32.totalorder %s20, 3
    %p51 = por %p49, %p50
    %p52 = scmp.ne.s32.totalorder %s44, %s47
    %p53 = scmp.eq.s32.totalorder %s20, 0
    %p54 = por %p52, %p53
    %p55 = scmp.ne.s32.totalorder %s44, %s47
    %p56 = scmp.eq.s32.totalorder %s25, 3
    %p57 = por %p55, %p56
    %p58 = scmp.ne.s32.totalorder %s47, %s48
    %p59 = scmp.eq.s32.totalorder %s25, 0
    %p60 = por %p58, %p59
    %p61 = scmp.ne.s32.totalorder %s47, %s48
    %p62 = scmp.eq.s32.totalorder %s26, 3
    %p63 = por %p61, %p62
    %p65 = scmp.ne.s32.totalorder %s48, %s64
    %p66 = scmp.eq.s32.totalorder %s26, 0
    %p67 = por %p65, %p66
    %s68 = sadd.s32 %s28, %s27
    %s69 = sadd.s32 %s35, %s39
    %s70 = ssub.s32 %s68, %s69
    %p71 = scmp.eq.s32.totalorder %s70, 0
    %s73 = sadd.s32 %s72, 1
    %s74 = scalar_select %p71, %s72, %s73
    %p77 = pneg %p71
    %p78 = scmp.eq.s32.totalorder %s20, 3
    %p79 = por %p77, %p78
    %p80 = scmp.ne.s32.totalorder %s72, %s75
    %p81 = scmp.eq.s32.totalorder %s20, 0
    %p82 = por %p80, %p81
    %p83 = scmp.ne.s32.totalorder %s72, %s75
    %p84 = scmp.eq.s32.totalorder %s25, 3
    %p85 = por %p83, %p84
    %p86 = scmp.ne.s32.totalorder %s75, %s76
    %p87 = scmp.eq.s32.totalorder %s25, 0
    %p88 = por %p86, %p87
    %p89 = scmp.ne.s32.totalorder %s75, %s76
    %p90 = scmp.eq.s32.totalorder %s26, 3
    %p91 = por %p89, %p90
    %p93 = scmp.ne.s32.totalorder %s76, %s92
    %p94 = scmp.eq.s32.totalorder %s26, 0
    %p95 = por %p93, %p94
    %s97 = sadd.s32 %s96, 1
    %p100 = scmp.eq.s32.totalorder %s20, 3
    %p101 = scmp.ne.s32.totalorder %s96, %s98
    %p102 = scmp.eq.s32.totalorder %s20, 0
    %p103 = por %p101, %p102
    %p104 = scmp.ne.s32.totalorder %s96, %s98
    %p105 = scmp.eq.s32.totalorder %s25, 3
    %p106 = por %p104, %p105
    %p107 = scmp.ne.s32.totalorder %s98, %s99
    %p108 = scmp.eq.s32.totalorder %s25, 0
    %p109 = por %p107, %p108
    %p110 = scmp.ne.s32.totalorder %s98, %s99
    %p111 = scmp.eq.s32.totalorder %s26, 3
    %p112 = por %p110, %p111
    %p114 = scmp.ne.s32.totalorder %s99, %s113
    %p115 = scmp.eq.s32.totalorder %s26, 0
    %p116 = por %p114, %p115
    %s118 = sadd.s32 %s117, 1
    %p121 = scmp.eq.s32.totalorder %s20, 3
    %p122 = scmp.ne.s32.totalorder %s117, %s119
    %p123 = scmp.eq.s32.totalorder %s20, 0
    %p124 = por %p122, %p123
    %p125 = scmp.ne.s32.totalorder %s117, %s119
    %p126 = scmp.eq.s32.totalorder %s25, 3
    %p127 = por %p125, %p126
    %p128 = scmp.ne.s32.totalorder %s119, %s120
    %p129 = scmp.eq.s32.totalorder %s25, 0
    %p130 = por %p128, %p129
    %p131 = scmp.ne.s32.totalorder %s119, %s120
    %p132 = scmp.eq.s32.totalorder %s26, 3
    %p133 = por %p131, %p132
    %p135 = scmp.ne.s32.totalorder %s120, %s134
    %p136 = scmp.eq.s32.totalorder %s26, 0
    %p137 = por %p135, %p136
    %s139 = sadd.s32 %s138, 1
    %p142 = scmp.eq.s32.totalorder %s20, 3
    %p143 = scmp.ne.s32.totalorder %s138, %s140
    %p144 = scmp.eq.s32.totalorder %s20, 0
    %p145 = por %p143, %p144
    %p146 = scmp.ne.s32.totalorder %s138, %s140
    %p147 = scmp.eq.s32.totalorder %s25, 3
    %p148 = por %p146, %p147
    %p149 = scmp.ne.s32.totalorder %s140, %s141
    %p150 = scmp.eq.s32.totalorder %s25, 0
    %p151 = por %p149, %p150
    %p152 = scmp.ne.s32.totalorder %s140, %s141
    %p153 = scmp.eq.s32.totalorder %s26, 3
    %p154 = por %p152, %p153
    %p156 = scmp.ne.s32.totalorder %s141, %s155
    %p157 = scmp.eq.s32.totalorder %s26, 0
    %p158 = por %p156, %p157
    %s160 = sadd.s32 %s159, 1
    %p163 = scmp.eq.s32.totalorder %s20, 3
    %p164 = scmp.ne.s32.totalorder %s159, %s161
    %p165 = scmp.eq.s32.totalorder %s20, 0
    %p166 = por %p164, %p165
    %p167 = scmp.ne.s32.totalorder %s159, %s161
    %p168 = scmp.eq.s32.totalorder %s25, 3
    %p169 = por %p167, %p168
    %p170 = scmp.ne.s32.totalorder %s161, %s162
    %p171 = scmp.eq.s32.totalorder %s25, 0
    %p172 = por %p170, %p171
    %p173 = scmp.ne.s32.totalorder %s161, %s162
    %p174 = scmp.eq.s32.totalorder %s26, 3
    %p175 = por %p173, %p174
    %p177 = scmp.ne.s32.totalorder %s162, %s176
    %p178 = scmp.eq.s32.totalorder %s26, 0
    %p179 = por %p177, %p178
    %s181 = sadd.s32 %s180, 1
    %p184 = scmp.eq.s32.totalorder %s20, 3
    %p185 = scmp.ne.s32.totalorder %s180, %s182
    %p186 = scmp.eq.s32.totalorder %s20, 0
    %p187 = por %p185, %p186
    %p188 = scmp.ne.s32.totalorder %s180, %s182
    %p189 = scmp.eq.s32.totalorder %s25, 3
    %p190 = por %p188, %p189
    %p191 = scmp.ne.s32.totalorder %s182, %s183
    %p192 = scmp.eq.s32.totalorder %s25, 0
    %p193 = por %p191, %p192
    %p194 = scmp.ne.s32.totalorder %s182, %s183
    %p195 = scmp.eq.s32.totalorder %s26, 3
    %p196 = por %p194, %p195
    %p198 = scmp.ne.s32.totalorder %s183, %s197
    %p199 = scmp.eq.s32.totalorder %s26, 0
    %p200 = por %p198, %p199
    %s202 = sadd.s32 %s201, 1
    %p205 = scmp.eq.s32.totalorder %s20, 3
    %p206 = scmp.ne.s32.totalorder %s201, %s203
    %p207 = scmp.eq.s32.totalorder %s20, 0
    %p208 = por %p206, %p207
    %p209 = scmp.ne.s32.totalorder %s201, %s203
    %p210 = scmp.eq.s32.totalorder %s25, 3
    %p211 = por %p209, %p210
    %p212 = scmp.ne.s32.totalorder %s203, %s204
    %p213 = scmp.eq.s32.totalorder %s25, 0
    %p214 = por %p212, %p213
    %p215 = scmp.ne.s32.totalorder %s203, %s204
    %p216 = scmp.eq.s32.totalorder %s26, 3
    %p217 = por %p215, %p216
    %p219 = scmp.ne.s32.totalorder %s204, %s218
    %p220 = scmp.eq.s32.totalorder %s26, 0
    %p221 = por %p219, %p220
    %s223 = sadd.s32 %s222, 1
    %p226 = scmp.eq.s32.totalorder %s20, 3
    %p227 = scmp.ne.s32.totalorder %s222, %s224
    %p228 = scmp.eq.s32.totalorder %s20, 0
    %p229 = por %p227, %p228
    %p230 = scmp.ne.s32.totalorder %s222, %s224
    %p231 = scmp.eq.s32.totalorder %s25, 3
    %p232 = por %p230, %p231
    %p233 = scmp.ne.s32.totalorder %s224, %s225
    %p234 = scmp.eq.s32.totalorder %s25, 0
    %p235 = por %p233, %p234
    %p236 = scmp.ne.s32.totalorder %s224, %s225
    %p237 = scmp.eq.s32.totalorder %s26, 3
    %p238 = por %p236, %p237
    %p240 = scmp.ne.s32.totalorder %s225, %s239
    %p241 = scmp.eq.s32.totalorder %s26, 0
    %p242 = por %p240, %p241
    %s244 = sadd.s32 %s243, 1
    %p247 = scmp.eq.s32.totalorder %s20, 3
    %p248 = scmp.ne.s32.totalorder %s243, %s245
    %p249 = scmp.eq.s32.totalorder %s20, 0
    %p250 = por %p248, %p249
    %p251 = scmp.ne.s32.totalorder %s243, %s245
    %p252 = scmp.eq.s32.totalorder %s25, 3
    %p253 = por %p251, %p252
    %p254 = scmp.ne.s32.totalorder %s245, %s246
    %p255 = scmp.eq.s32.totalorder %s25, 0
    %p256 = por %p254, %p255
    %p257 = scmp.ne.s32.totalorder %s245, %s246
    %p258 = scmp.eq.s32.totalorder %s26, 3
    %p259 = por %p257, %p258
    %p261 = scmp.ne.s32.totalorder %s246, %s260
    %p262 = scmp.eq.s32.totalorder %s26, 0
    %p263 = por %p261, %p262
    %s265 = sadd.s32 %s264, 1
    %p268 = scmp.eq.s32.totalorder %s20, 3
    %p269 = scmp.ne.s32.totalorder %s264, %s266
    %p270 = scmp.eq.s32.totalorder %s20, 0
    %p271 = por %p269, %p270
    %p272 = scmp.ne.s32.totalorder %s264, %s266
    %p273 = scmp.eq.s32.totalorder %s25, 3
    %p274 = por %p272, %p273
    %p275 = scmp.ne.s32.totalorder %s266, %s267
    %p276 = scmp.eq.s32.totalorder %s25, 0
    %p277 = por %p275, %p276
    %p278 = scmp.ne.s32.totalorder %s266, %s267
    %p279 = scmp.eq.s32.totalorder %s26, 3
    %p280 = por %p278, %p279
    %p282 = scmp.ne.s32.totalorder %s267, %s281
    %p283 = scmp.eq.s32.totalorder %s26, 0
    %p284 = por %p282, %p283
    %s286 = sadd.s32 %s285, 1
    %p289 = scmp.eq.s32.totalorder %s20, 3
    %p290 = scmp.ne.s32.totalorder %s285, %s287
    %p291 = scmp.eq.s32.totalorder %s20, 0
    %p292 = por %p290, %p291
    %p293 = scmp.ne.s32.totalorder %s285, %s287
    %p294 = scmp.eq.s32.totalorder %s25, 3
    %p295 = por %p293, %p294
    %p296 = scmp.ne.s32.totalorder %s287, %s288
    %p297 = scmp.eq.s32.totalorder %s25, 0
    %p298 = por %p296, %p297
    %p299 = scmp.ne.s32.totalorder %s287, %s288
    %p300 = scmp.eq.s32.totalorder %s26, 3
    %p301 = por %p299, %p300
    %p303 = scmp.ne.s32.totalorder %s288, %s302
    %p304 = scmp.eq.s32.totalorder %s26, 0
    %p305 = por %p303, %p304
    %s307 = sadd.s32 %s306, 1
    %p310 = scmp.eq.s32.totalorder %s20, 3
    %p311 = scmp.ne.s32.totalorder %s306, %s308
    %p312 = scmp.eq.s32.totalorder %s20, 0
    %p313 = por %p311, %p312
    %p314 = scmp.ne.s32.totalorder %s306, %s308
    %p315 = scmp.eq.s32.totalorder %s25, 3
    %p316 = por %p314, %p315
    %p317 = scmp.ne.s32.totalorder %s308, %s309
    %p318 = scmp.eq.s32.totalorder %s25, 0
    %p319 = por %p317, %p318
    %p320 = scmp.ne.s32.totalorder %s308, %s309
    %p321 = scmp.eq.s32.totalorder %s26, 3
    %p322 = por %p320, %p321
    %p324 = scmp.ne.s32.totalorder %s309, %s323
    %p325 = scmp.eq.s32.totalorder %s26, 0
    %p326 = por %p324, %p325
    %s328 = sadd.s32 %s327, 1
    %p331 = scmp.eq.s32.totalorder %s20, 3
    %p332 = scmp.ne.s32.totalorder %s327, %s329
    %p333 = scmp.eq.s32.totalorder %s20, 0
    %p334 = por %p332, %p333
    %p335 = scmp.ne.s32.totalorder %s327, %s329
    %p336 = scmp.eq.s32.totalorder %s25, 3
    %p337 = por %p335, %p336
    %p338 = scmp.ne.s32.totalorder %s329, %s330
    %p339 = scmp.eq.s32.totalorder %s25, 0
    %p340 = por %p338, %p339
    %p341 = scmp.ne.s32.totalorder %s329, %s330
    %p342 = scmp.eq.s32.totalorder %s26, 3
    %p343 = por %p341, %p342
    %p345 = scmp.ne.s32.totalorder %s330, %s344
    %p346 = scmp.eq.s32.totalorder %s26, 0
    %p347 = por %p345, %p346
    %s348 = ssub.s32 %s27, %s39
    %p349 = scmp.eq.s32.totalorder %s348, 0
    %s351 = sadd.s32 %s350, 1
    %s352 = scalar_select %p349, %s350, %s351
    %p355 = pneg %p349
    %p356 = scmp.eq.s32.totalorder %s20, 3
    %p357 = por %p355, %p356
    %p358 = scmp.ne.s32.totalorder %s350, %s353
    %p359 = scmp.eq.s32.totalorder %s20, 0
    %p360 = por %p358, %p359
    %p361 = scmp.ne.s32.totalorder %s350, %s353
    %p362 = scmp.eq.s32.totalorder %s25, 3
    %p363 = por %p361, %p362
    %p364 = scmp.ne.s32.totalorder %s353, %s354
    %p365 = scmp.eq.s32.totalorder %s25, 0
    %p366 = por %p364, %p365
    %p367 = scmp.ne.s32.totalorder %s353, %s354
    %p368 = scmp.eq.s32.totalorder %s26, 3
    %p369 = por %p367, %p368
    %p371 = scmp.ne.s32.totalorder %s354, %s370
    %p372 = scmp.eq.s32.totalorder %s26, 0
    %p373 = por %p371, %p372
    %p374 = scmp.le.s32.totalorder 1, %s20
    %p375 = scmp.lt.s32.totalorder %s20, 5
    %p376 = pnand %p374, %p375
    %p377 = pneg %p376
    // Predicated region
    $region9: #{liif_forward.1} parent=5 // pred_check
      _
    $region10: #{liif_forward.1} parent=5 // pred_check_branch
      %379 = sbr.rel (%p376) target = $region12
    $region11: #{liif_forward.1} parent=5 // pred_region
      %s380 = ssub.s32 %s20, 1
      // Predicated region
      $region13: #{liif_forward.1} parent=11 // pred_check
        %p381 = pneg %p109
      $region14: #{liif_forward.1} parent=11 // pred_check_branch
        %383 = sbr.rel (%p381) target = $region16
      $region15: #{liif_forward.1} parent=11 // pred_region
        _
      $region16: #{liif_forward.1} parent=11 // pred_fallthru
        _
      // Predicated region
      $region17: #{liif_forward.1} parent=11 // pred_check
        %p384 = pneg %p130
      $region18: #{liif_forward.1} parent=11 // pred_check_branch
        %386 = sbr.rel (%p384) target = $region20
      $region19: #{liif_forward.1} parent=11 // pred_region
        _
      $region20: #{liif_forward.1} parent=11 // pred_fallthru
        _
      // Predicated region
      $region21: #{liif_forward.1} parent=11 // pred_check
        %p387 = pneg %p151
      $region22: #{liif_forward.1} parent=11 // pred_check_branch
        %389 = sbr.rel (%p387) target = $region24
      $region23: #{liif_forward.1} parent=11 // pred_region
        _
      $region24: #{liif_forward.1} parent=11 // pred_fallthru
        _
      // Predicated region
      $region25: #{liif_forward.1} parent=11 // pred_check
        %p390 = pneg %p172
      $region26: #{liif_forward.1} parent=11 // pred_check_branch
        %392 = sbr.rel (%p390) target = $region28
      $region27: #{liif_forward.1} parent=11 // pred_region
        _
      $region28: #{liif_forward.1} parent=11 // pred_fallthru
        _
      // Predicated region
      $region29: #{liif_forward.1} parent=11 // pred_check
        %p393 = pneg %p193
      $region30: #{liif_forward.1} parent=11 // pred_check_branch
        %395 = sbr.rel (%p393) target = $region32
      $region31: #{liif_forward.1} parent=11 // pred_region
        _
      $region32: #{liif_forward.1} parent=11 // pred_fallthru
        _
      // Predicated region
      $region33: #{liif_forward.1} parent=11 // pred_check
        %p396 = pneg %p214
      $region34: #{liif_forward.1} parent=11 // pred_check_branch
        %398 = sbr.rel (%p396) target = $region36
      $region35: #{liif_forward.1} parent=11 // pred_region
        _
      $region36: #{liif_forward.1} parent=11 // pred_fallthru
        _
      // Predicated region
      $region37: #{liif_forward.1} parent=11 // pred_check
        %p399 = pneg %p235
      $region38: #{liif_forward.1} parent=11 // pred_check_branch
        %401 = sbr.rel (%p399) target = $region40
      $region39: #{liif_forward.1} parent=11 // pred_region
        _
      $region40: #{liif_forward.1} parent=11 // pred_fallthru
        _
      // Predicated region
      $region41: #{liif_forward.1} parent=11 // pred_check
        %p402 = pneg %p256
      $region42: #{liif_forward.1} parent=11 // pred_check_branch
        %404 = sbr.rel (%p402) target = $region44
      $region43: #{liif_forward.1} parent=11 // pred_region
        _
      $region44: #{liif_forward.1} parent=11 // pred_fallthru
        _
      // Predicated region
      $region45: #{liif_forward.1} parent=11 // pred_check
        %p405 = pneg %p277
      $region46: #{liif_forward.1} parent=11 // pred_check_branch
        %407 = sbr.rel (%p405) target = $region48
      $region47: #{liif_forward.1} parent=11 // pred_region
        _
      $region48: #{liif_forward.1} parent=11 // pred_fallthru
        _
      // Predicated region
      $region49: #{liif_forward.1} parent=11 // pred_check
        %p408 = pneg %p298
      $region50: #{liif_forward.1} parent=11 // pred_check_branch
        %410 = sbr.rel (%p408) target = $region52
      $region51: #{liif_forward.1} parent=11 // pred_region
        _
      $region52: #{liif_forward.1} parent=11 // pred_fallthru
        _
      // Predicated region
      $region53: #{liif_forward.1} parent=11 // pred_check
        %p411 = pneg %p319
      $region54: #{liif_forward.1} parent=11 // pred_check_branch
        %413 = sbr.rel (%p411) target = $region56
      $region55: #{liif_forward.1} parent=11 // pred_region
        _
      $region56: #{liif_forward.1} parent=11 // pred_fallthru
        _
      // Predicated region
      $region57: #{liif_forward.1} parent=11 // pred_check
        %p414 = pneg %p340
      $region58: #{liif_forward.1} parent=11 // pred_check_branch
        %416 = sbr.rel (%p414) target = $region60
      $region59: #{liif_forward.1} parent=11 // pred_region
        _
      $region60: #{liif_forward.1} parent=11 // pred_fallthru
        _
    $region12: #{liif_forward.1} parent=5 // pred_fallthru
      _
    %p417 = scmp.lt.s32.totalorder %s20, 4
    // Predicated region
    $region61: #{liif_forward.1} parent=5 // pred_check
      %p418 = pneg %p417
    $region62: #{liif_forward.1} parent=5 // pred_check_branch
      %420 = sbr.rel (%p418) target = $region64
    $region63: #{liif_forward.1} parent=5 // pred_region
      // Predicated region
      $region65: #{liif_forward.1} parent=63 // pred_check
        %p421 = pneg %p54
      $region66: #{liif_forward.1} parent=63 // pred_check_branch
        %423 = sbr.rel (%p421) target = $region68
      $region67: #{liif_forward.1} parent=63 // pred_region
        %s424 = sadd.s32 %s28, %s27
        %s425 = smul.u32 16, %s424
        %p426 = scmp.lt.s32.totalorder %s425, 63
        %s427 = scalar_select %p426, %s425, 63
        %s428 = smul.addr %s427, 4
        %s429 = scalar_lea.vmem %s0, %s428
        %s430 = sadd.s32 %s28, %s27
        %s431 = smul.u32 16, %s430
      $region68: #{liif_forward.1} parent=63 // pred_fallthru
        _
      // Predicated region
      $region69: #{liif_forward.1} parent=63 // pred_check
        %p432 = pneg %p82
      $region70: #{liif_forward.1} parent=63 // pred_check_branch
        %434 = sbr.rel (%p432) target = $region72
      $region71: #{liif_forward.1} parent=63 // pred_region
        %s435 = sadd.s32 %s28, %s27
        %s436 = smul.u32 16, %s435
        %p437 = scmp.lt.s32.totalorder %s436, 63
        %s438 = scalar_select %p437, %s436, 63
        %s439 = smul.addr %s438, 8
        %s440 = scalar_lea.vmem %s1, %s439
        %s441 = sadd.s32 %s28, %s27
        %s442 = smul.u32 16, %s441
      $region72: #{liif_forward.1} parent=63 // pred_fallthru
        _
    $region64: #{liif_forward.1} parent=5 // pred_fallthru
      _
    %p443 = scmp.le.s32.totalorder 1, %s20
    %p444 = scmp.lt.s32.totalorder %s20, 5
    %p445 = pnand %p443, %p444
    %p446 = pneg %p445
    // Predicated region
    $region73: #{liif_forward.1} parent=5 // pred_check
      _
    $region74: #{liif_forward.1} parent=5 // pred_check_branch
      %448 = sbr.rel (%p445) target = $region76
    $region75: #{liif_forward.1} parent=5 // pred_region
      %s449 = ssub.s32 %s20, 1
      %s450 = sadd.s32 %s30, %s29
      %s451 = smul.u32 16, %s450
      %p452 = scmp.lt.s32.totalorder %s451, 63
      %s453 = scalar_select %p452, %s451, 63
      %s454 = smul.addr %s453, 4
      %s455 = scalar_lea.vmem %s0, %s454
      %p456 = pneg %p60
      %p457 = pneg %p57
      %s458 = sadd.s32 %s30, %s29
      %s459 = smul.u32 16, %s458
      %p460 = scmp.lt.s32.totalorder %s459, 63
      %s461 = scalar_select %p460, %s459, 63
      %s462 = smul.addr %s461, 8
      %s463 = scalar_lea.vmem %s1, %s462
      %p464 = pneg %p88
      %p465 = pneg %p85
      %p466 = pneg %p109
      %p467 = pneg %p106
      %p468 = pneg %p130
      %p469 = pneg %p127
      %p470 = pneg %p151
      %p471 = pneg %p148
      %p472 = pneg %p172
      %p473 = pneg %p169
      %p474 = pneg %p193
      %p475 = pneg %p190
      %p476 = pneg %p214
      %p477 = pneg %p211
      %p478 = pneg %p235
      %p479 = pneg %p232
      %p480 = pneg %p256
      %p481 = pneg %p253
      %p482 = pneg %p277
      %p483 = pneg %p274
      %p484 = pneg %p298
      %p485 = pneg %p295
      %p486 = pneg %p319
      %p487 = pneg %p316
      %p488 = pneg %p340
      %p489 = pneg %p337
      %p490 = pneg %p366
      %p491 = pneg %p363
      %s492 = smul.u32 16, %s29
      %p493 = scmp.lt.s32.totalorder %s492, 15
      %s494 = scalar_select %p493, %s492, 15
      %s495 = smul.addr %s494, 8
      %s496 = scalar_lea.vmem %s14, %s495
      %s497 = sadd.s32 %s30, %s29
      %s498 = smul.u32 16, %s497
      %p499 = scmp.lt.s32.totalorder %s498, 63
      %s500 = scalar_select %p499, %s498, 63
      %s501 = smul.addr %s500, 4
      %s502 = scalar_lea.vmem %s0, %s501
      %s503 = sadd.s32 %s30, %s29
      %s504 = smul.u32 16, %s503
      %s505 = sadd.s32 %s30, %s29
      %s506 = smul.u32 16, %s505
      %p507 = scmp.lt.s32.totalorder %s506, 63
      %s508 = scalar_select %p507, %s506, 63
      %s509 = smul.addr %s508, 8
      %s510 = scalar_lea.vmem %s1, %s509
      %s511 = sadd.s32 %s30, %s29
      %s512 = smul.u32 16, %s511
      %s513 = smul.u32 16, %s29
      %p514 = scmp.lt.s32.totalorder %s513, 15
      %s515 = scalar_select %p514, %s513, 15
      %s516 = smul.addr %s515, 8
      %s517 = scalar_lea.vmem %s14, %s516
      %s518 = smul.u32 16, %s29
      %p520 = scmp.eq.s32.totalorder %s30, 0
      // Predicated region
      $region77: #{liif_forward.1} parent=75 // pred_check
        %p521 = pneg %p520
      $region78: #{liif_forward.1} parent=75 // pred_check_branch
        %523 = sbr.rel (%p521) target = $region80
      $region79: #{liif_forward.1} parent=75 // pred_region
        %524 = vst [vmem:[#allocation2] sm:$0xff] 0.0
        %525 = vst [vmem:[#allocation2 + $0x8] sm:$0xff] 0.0
        %526 = vst [vmem:[#allocation2 + $0x10] sm:$0xff] 0.0
        %527 = vst [vmem:[#allocation2 + $0x18] sm:$0xff] 0.0
        %528 = vst [vmem:[#allocation2 + $0x20] sm:$0xff] 0.0
        %529 = vst [vmem:[#allocation2 + $0x28] sm:$0xff] 0.0
        %530 = vst [vmem:[#allocation2 + $0x30] sm:$0xff] 0.0
        %531 = vst [vmem:[#allocation2 + $0x38] sm:$0xff] 0.0
        %532 = vst [vmem:[#allocation2 + $0x40] sm:$0xff] 0.0
        %533 = vst [vmem:[#allocation2 + $0x48] sm:$0xff] 0.0
        %534 = vst [vmem:[#allocation2 + $0x50] sm:$0xff] 0.0
        %535 = vst [vmem:[#allocation2 + $0x58] sm:$0xff] 0.0
        %536 = vst [vmem:[#allocation2 + $0x60] sm:$0xff] 0.0
        %537 = vst [vmem:[#allocation2 + $0x68] sm:$0xff] 0.0
        %538 = vst [vmem:[#allocation2 + $0x70] sm:$0xff] 0.0
        %539 = vst [vmem:[#allocation2 + $0x78] sm:$0xff] 0.0
      $region80: #{liif_forward.1} parent=75 // pred_fallthru
        _
      %v540 = vld [vmem:[%s502] sm:$0xf]
      %v541 = vld [vmem:[%s502 + $0x4] sm:$0xf]
      %v542 = vld [vmem:[%s502 + $0x8] sm:$0xf]
      %v543 = vld [vmem:[%s502 + $0xc] sm:$0xf]
      %v544 = vld [vmem:[%s502 + $0x10] sm:$0xf]
      %v545 = vld [vmem:[%s502 + $0x14] sm:$0xf]
      %v546 = vld [vmem:[%s502 + $0x18] sm:$0xf]
      %v547 = vld [vmem:[%s502 + $0x1c] sm:$0xf]
      %v548 = vld [vmem:[%s502 + $0x20] sm:$0xf]
      %v549 = vld [vmem:[%s502 + $0x24] sm:$0xf]
      %v550 = vld [vmem:[%s502 + $0x28] sm:$0xf]
      %v551 = vld [vmem:[%s502 + $0x2c] sm:$0xf]
      %v552 = vld [vmem:[%s502 + $0x30] sm:$0xf]
      %v553 = vld [vmem:[%s502 + $0x34] sm:$0xf]
      %v554 = vld [vmem:[%s502 + $0x38] sm:$0xf]
      %v555 = vld [vmem:[%s502 + $0x3c] sm:$0xf]
      %v556 = vld [vmem:[%s2] sm:$0xff]
      %v557 = vld [vmem:[%s2 + $0x8] sm:$0xff]
      %v558 = vld [vmem:[%s2 + $0x10] sm:$0xff]
      %v559 = vld [vmem:[%s2 + $0x18] sm:$0xff]
      %v560 = vld [vmem:[%s2 + $0x20] sm:$0xff]
      %v561 = vld [vmem:[%s3] sm:$0x3]
      %v563 = vperm.slane %v561, 0
      %v564 = vperm.slane %v561, 1
      %v583 = vunpack.c.l.b16 %v540
      %v584 = vunpack.c.l.b16 %v541
      %v585 = vunpack.c.l.b16 %v542
      %v586 = vunpack.c.l.b16 %v543
      %v587 = vunpack.c.l.b16 %v544
      %v588 = vunpack.c.l.b16 %v545
      %v589 = vunpack.c.l.b16 %v546
      %v590 = vunpack.c.l.b16 %v547
      %v591 = vunpack.c.l.b16 %v548
      %v592 = vunpack.c.l.b16 %v549
      %v593 = vunpack.c.l.b16 %v550
      %v594 = vunpack.c.l.b16 %v551
      %v595 = vunpack.c.l.b16 %v552
      %v596 = vunpack.c.l.b16 %v553
      %v597 = vunpack.c.l.b16 %v554
      %v598 = vunpack.c.l.b16 %v555
      %v599 = vpack.c.b16 %v584, %v583
      %v600 = vpack.c.b16 %v586, %v585
      %v601 = vpack.c.b16 %v588, %v587
      %v602 = vpack.c.b16 %v590, %v589
      %v603 = vpack.c.b16 %v592, %v591
      %v604 = vpack.c.b16 %v594, %v593
      %v605 = vpack.c.b16 %v596, %v595
      %v606 = vpack.c.b16 %v598, %v597
      %v612 = vunpack.c.l.b16 %v556
      %v613 = vunpack.c.h.b16 %v556
      %v614 = vunpack.c.l.b16 %v557
      %v615 = vunpack.c.h.b16 %v557
      %v616 = vunpack.c.l.b16 %v558
      %v617 = vunpack.c.h.b16 %v558
      %v618 = vunpack.c.l.b16 %v559
      %v619 = vunpack.c.h.b16 %v559
      %v620 = vunpack.c.l.b16 %v560
      %v621 = vunpack.c.h.b16 %v560
      %v622 = vpack.c.b16 %v614, %v612
      %v623 = vpack.c.b16 %v615, %v613
      %v624 = vpack.c.b16 %v618, %v616
      %v625 = vpack.c.b16 %v619, %v617
      %v626 = vpack.c.b16 %v620, %v620
      %v627 = vpack.c.b16 %v621, %v621
      %vm632 = vcmask 326656
      %v634 = vsel %vm632, %v599, 0
      %v637 = vsel %vm632, %v600, 0
      %v640 = vsel %vm632, %v601, 0
      %v643 = vsel %vm632, %v602, 0
      %v646 = vsel %vm632, %v603, 0
      %v649 = vsel %vm632, %v604, 0
      %v652 = vsel %vm632, %v605, 0
      %v655 = vsel %vm632, %v606, 0
      %vm657 = vcmask 1043456
      %v659 = vsel %vm657, %v626, 0
      %v662 = vsel %vm657, %v627, 0
      %664 = vmatpush.bf16.msra.mxu0 0
      %665 = vmatpush.bf16.msra.mxu0 0
      %666 = vmatpush.bf16.msra.mxu0 0
      %667 = vmatpush.bf16.msra.mxu0 0
      %668 = vmatpush.bf16.msra.mxu0 0
      %669 = vmatpush.bf16.msra.mxu0 %v659
      %670 = vmatpush.bf16.msra.mxu0 %v624
      %671 = vmatpush.bf16.msra.mxu0 %v622
      %672 = vmatmul.bf16.gmra.mxu0 %v634
      %v673 = vpop.f32.mrf.mxu0
      %v674 = vadd.f32 %v563, %v673
      %v675 = vpop.f32.mrf.mxu0
      %v676 = vadd.f32 %v563, %v675
      %677 = vmatmul.bf16.gmra.mxu0 %v637
      %v678 = vpop.f32.mrf.mxu0
      %v679 = vadd.f32 %v563, %v678
      %v680 = vpop.f32.mrf.mxu0
      %v681 = vadd.f32 %v563, %v680
      %682 = vmatmul.bf16.gmra.mxu0 %v640
      %v683 = vpop.f32.mrf.mxu0
      %v684 = vadd.f32 %v563, %v683
      %v685 = vpop.f32.mrf.mxu0
      %v686 = vadd.f32 %v563, %v685
      %687 = vmatmul.bf16.gmra.mxu0 %v643
      %v688 = vpop.f32.mrf.mxu0
      %v689 = vadd.f32 %v563, %v688
      %v690 = vpop.f32.mrf.mxu0
      %v691 = vadd.f32 %v563, %v690
      %692 = vmatmul.bf16.gmra.mxu0 %v646
      %v693 = vpop.f32.mrf.mxu0
      %v694 = vadd.f32 %v563, %v693
      %v695 = vpop.f32.mrf.mxu0
      %v696 = vadd.f32 %v563, %v695
      %697 = vmatmul.bf16.gmra.mxu0 %v649
      %v698 = vpop.f32.mrf.mxu0
      %v699 = vadd.f32 %v563, %v698
      %v700 = vpop.f32.mrf.mxu0
      %v701 = vadd.f32 %v563, %v700
      %702 = vmatmul.bf16.gmra.mxu0 %v652
      %v703 = vpop.f32.mrf.mxu0
      %v704 = vadd.f32 %v563, %v703
      %v705 = vpop.f32.mrf.mxu0
      %v706 = vadd.f32 %v563, %v705
      %707 = vmatmul.bf16.gmra.mxu0 %v655
      %v708 = vpop.f32.mrf.mxu0
      %v709 = vadd.f32 %v563, %v708
      %v710 = vpop.f32.mrf.mxu0
      %v711 = vadd.f32 %v563, %v710
      %712 = vdwg.mxu0
      %713 = vmatpush.bf16.msra.mxu0 0
      %714 = vmatpush.bf16.msra.mxu0 0
      %715 = vmatpush.bf16.msra.mxu0 0
      %716 = vmatpush.bf16.msra.mxu0 0
      %717 = vmatpush.bf16.msra.mxu0 0
      %718 = vmatpush.bf16.msra.mxu0 %v662
      %719 = vmatpush.bf16.msra.mxu0 %v625
      %720 = vmatpush.bf16.msra.mxu0 %v623
      %721 = vmatmul.bf16.gmra.mxu0 %v634
      %v722 = vpop.f32.mrf.mxu0
      %v723 = vadd.f32 %v564, %v722
      %v724 = vpop.f32.mrf.mxu0
      %v725 = vadd.f32 %v564, %v724
      %726 = vmatmul.bf16.gmra.mxu0 %v637
      %v727 = vpop.f32.mrf.mxu0
      %v728 = vadd.f32 %v564, %v727
      %v729 = vpop.f32.mrf.mxu0
      %v730 = vadd.f32 %v564, %v729
      %731 = vmatmul.bf16.gmra.mxu0 %v640
      %v732 = vpop.f32.mrf.mxu0
      %v733 = vadd.f32 %v564, %v732
      %v734 = vpop.f32.mrf.mxu0
      %v735 = vadd.f32 %v564, %v734
      %736 = vmatmul.bf16.gmra.mxu0 %v643
      %v737 = vpop.f32.mrf.mxu0
      %v738 = vadd.f32 %v564, %v737
      %v739 = vpop.f32.mrf.mxu0
      %v740 = vadd.f32 %v564, %v739
      %741 = vmatmul.bf16.gmra.mxu0 %v646
      %v742 = vpop.f32.mrf.mxu0
      %v743 = vadd.f32 %v564, %v742
      %v744 = vpop.f32.mrf.mxu0
      %v745 = vadd.f32 %v564, %v744
      %746 = vmatmul.bf16.gmra.mxu0 %v649
      %v747 = vpop.f32.mrf.mxu0
      %v748 = vadd.f32 %v564, %v747
      %v749 = vpop.f32.mrf.mxu0
      %v750 = vadd.f32 %v564, %v749
      %751 = vmatmul.bf16.gmra.mxu0 %v652
      %v752 = vpop.f32.mrf.mxu0
      %v753 = vadd.f32 %v564, %v752
      %v754 = vpop.f32.mrf.mxu0
      %v755 = vadd.f32 %v564, %v754
      %756 = vmatmul.bf16.gmra.mxu0 %v655
      %v757 = vpop.f32.mrf.mxu0
      %v758 = vadd.f32 %v564, %v757
      %v759 = vpop.f32.mrf.mxu0
      %v760 = vadd.f32 %v564, %v759
      %761 = vdwg.mxu0
      %v762 = vmax.f32 %v674, 0.0
      %v763 = vmax.f32 %v723, 0.0
      %v764 = vmax.f32 %v676, 0.0
      %v765 = vmax.f32 %v725, 0.0
      %v766 = vmax.f32 %v679, 0.0
      %v767 = vmax.f32 %v728, 0.0
      %v768 = vmax.f32 %v681, 0.0
      %v769 = vmax.f32 %v730, 0.0
      %v770 = vmax.f32 %v684, 0.0
      %v771 = vmax.f32 %v733, 0.0
      %v772 = vmax.f32 %v686, 0.0
      %v773 = vmax.f32 %v735, 0.0
      %v774 = vmax.f32 %v689, 0.0
      %v775 = vmax.f32 %v738, 0.0
      %v776 = vmax.f32 %v691, 0.0
      %v777 = vmax.f32 %v740, 0.0
      %v778 = vmax.f32 %v694, 0.0
      %v779 = vmax.f32 %v743, 0.0
      %v780 = vmax.f32 %v696, 0.0
      %v781 = vmax.f32 %v745, 0.0
      %v782 = vmax.f32 %v699, 0.0
      %v783 = vmax.f32 %v748, 0.0
      %v784 = vmax.f32 %v701, 0.0
      %v785 = vmax.f32 %v750, 0.0
      %v786 = vmax.f32 %v704, 0.0
      %v787 = vmax.f32 %v753, 0.0
      %v788 = vmax.f32 %v706, 0.0
      %v789 = vmax.f32 %v755, 0.0
      %v790 = vmax.f32 %v709, 0.0
      %v791 = vmax.f32 %v758, 0.0
      %v792 = vmax.f32 %v711, 0.0
      %v793 = vmax.f32 %v760, 0.0
      %v794 = vpack.c.bf16 %v764, %v762
      %v795 = vpack.c.bf16 %v765, %v763
      %v796 = vpack.c.bf16 %v768, %v766
      %v797 = vpack.c.bf16 %v769, %v767
      %v798 = vpack.c.bf16 %v772, %v770
      %v799 = vpack.c.bf16 %v773, %v771
      %v800 = vpack.c.bf16 %v776, %v774
      %v801 = vpack.c.bf16 %v777, %v775
      %v802 = vpack.c.bf16 %v780, %v778
      %v803 = vpack.c.bf16 %v781, %v779
      %v804 = vpack.c.bf16 %v784, %v782
      %v805 = vpack.c.bf16 %v785, %v783
      %v806 = vpack.c.bf16 %v788, %v786
      %v807 = vpack.c.bf16 %v789, %v787
      %v808 = vpack.c.bf16 %v792, %v790
      %v809 = vpack.c.bf16 %v793, %v791
      %v810 = vld [vmem:[%s4] sm:$0xff]
      %v811 = vld [vmem:[%s4 + $0x8] sm:$0xff]
      %v812 = vld [vmem:[%s4 + $0x10] sm:$0xff]
      %v813 = vld [vmem:[%s4 + $0x18] sm:$0xff]
      %v814 = vld [vmem:[%s4 + $0x20] sm:$0xff]
      %v815 = vld [vmem:[%s4 + $0x28] sm:$0xff]
      %v816 = vld [vmem:[%s4 + $0x30] sm:$0xff]
      %v817 = vld [vmem:[%s4 + $0x38] sm:$0xff]
      %v818 = vld [vmem:[%s4 + $0x40] sm:$0xff]
      %v819 = vld [vmem:[%s4 + $0x48] sm:$0xff]
      %v820 = vld [vmem:[%s4 + $0x50] sm:$0xff]
      %v821 = vld [vmem:[%s4 + $0x58] sm:$0xff]
      %v822 = vld [vmem:[%s4 + $0x60] sm:$0xff]
      %v823 = vld [vmem:[%s4 + $0x68] sm:$0xff]
      %v824 = vld [vmem:[%s4 + $0x70] sm:$0xff]
      %v825 = vld [vmem:[%s4 + $0x78] sm:$0xff]
      %v826 = vld [vmem:[%s4 + $0x80] sm:$0xff]
      %v827 = vld [vmem:[%s4 + $0x88] sm:$0xff]
      %v828 = vld [vmem:[%s4 + $0x90] sm:$0xff]
      %v829 = vld [vmem:[%s4 + $0x98] sm:$0xff]
      %v830 = vld [vmem:[%s4 + $0xa0] sm:$0xff]
      %v831 = vld [vmem:[%s4 + $0xa8] sm:$0xff]
      %v832 = vld [vmem:[%s4 + $0xb0] sm:$0xff]
      %v833 = vld [vmem:[%s4 + $0xb8] sm:$0xff]
      %v834 = vld [vmem:[%s4 + $0xc0] sm:$0xff]
      %v835 = vld [vmem:[%s4 + $0xc8] sm:$0xff]
      %v836 = vld [vmem:[%s4 + $0xd0] sm:$0xff]
      %v837 = vld [vmem:[%s4 + $0xd8] sm:$0xff]
      %v838 = vld [vmem:[%s4 + $0xe0] sm:$0xff]
      %v839 = vld [vmem:[%s4 + $0xe8] sm:$0xff]
      %v840 = vld [vmem:[%s4 + $0xf0] sm:$0xff]
      %v841 = vld [vmem:[%s4 + $0xf8] sm:$0xff]
      %v842 = vld [vmem:[%s5] sm:$0x3]
      %v844 = vperm.slane %v842, 0
      %v845 = vperm.slane %v842, 1
      %v880 = vunpack.c.l.b16 %v810
      %v881 = vunpack.c.h.b16 %v810
      %v882 = vunpack.c.l.b16 %v811
      %v883 = vunpack.c.h.b16 %v811
      %v884 = vunpack.c.l.b16 %v812
      %v885 = vunpack.c.h.b16 %v812
      %v886 = vunpack.c.l.b16 %v813
      %v887 = vunpack.c.h.b16 %v813
      %v888 = vunpack.c.l.b16 %v814
      %v889 = vunpack.c.h.b16 %v814
      %v890 = vunpack.c.l.b16 %v815
      %v891 = vunpack.c.h.b16 %v815
      %v892 = vunpack.c.l.b16 %v816
      %v893 = vunpack.c.h.b16 %v816
      %v894 = vunpack.c.l.b16 %v817
      %v895 = vunpack.c.h.b16 %v817
      %v896 = vunpack.c.l.b16 %v818
      %v897 = vunpack.c.h.b16 %v818
      %v898 = vunpack.c.l.b16 %v819
      %v899 = vunpack.c.h.b16 %v819
      %v900 = vunpack.c.l.b16 %v820
      %v901 = vunpack.c.h.b16 %v820
      %v902 = vunpack.c.l.b16 %v821
      %v903 = vunpack.c.h.b16 %v821
      %v904 = vunpack.c.l.b16 %v822
      %v905 = vunpack.c.h.b16 %v822
      %v906 = vunpack.c.l.b16 %v823
      %v907 = vunpack.c.h.b16 %v823
      %v908 = vunpack.c.l.b16 %v824
      %v909 = vunpack.c.h.b16 %v824
      %v910 = vunpack.c.l.b16 %v825
      %v911 = vunpack.c.h.b16 %v825
      %v912 = vunpack.c.l.b16 %v826
      %v913 = vunpack.c.h.b16 %v826
      %v914 = vunpack.c.l.b16 %v827
      %v915 = vunpack.c.h.b16 %v827
      %v916 = vunpack.c.l.b16 %v828
      %v917 = vunpack.c.h.b16 %v828
      %v918 = vunpack.c.l.b16 %v829
      %v919 = vunpack.c.h.b16 %v829
      %v920 = vunpack.c.l.b16 %v830
      %v921 = vunpack.c.h.b16 %v830
      %v922 = vunpack.c.l.b16 %v831
      %v923 = vunpack.c.h.b16 %v831
      %v924 = vunpack.c.l.b16 %v832
      %v925 = vunpack.c.h.b16 %v832
      %v926 = vunpack.c.l.b16 %v833
      %v927 = vunpack.c.h.b16 %v833
      %v928 = vunpack.c.l.b16 %v834
      %v929 = vunpack.c.h.b16 %v834
      %v930 = vunpack.c.l.b16 %v835
      %v931 = vunpack.c.h.b16 %v835
      %v932 = vunpack.c.l.b16 %v836
      %v933 = vunpack.c.h.b16 %v836
      %v934 = vunpack.c.l.b16 %v837
      %v935 = vunpack.c.h.b16 %v837
      %v936 = vunpack.c.l.b16 %v838
      %v937 = vunpack.c.h.b16 %v838
      %v938 = vunpack.c.l.b16 %v839
      %v939 = vunpack.c.h.b16 %v839
      %v940 = vunpack.c.l.b16 %v840
      %v941 = vunpack.c.h.b16 %v840
      %v942 = vunpack.c.l.b16 %v841
      %v943 = vunpack.c.h.b16 %v841
      %v944 = vpack.c.b16 %v882, %v880
      %v945 = vpack.c.b16 %v883, %v881
      %v946 = vpack.c.b16 %v886, %v884
      %v947 = vpack.c.b16 %v887, %v885
      %v948 = vpack.c.b16 %v890, %v888
      %v949 = vpack.c.b16 %v891, %v889
      %v950 = vpack.c.b16 %v894, %v892
      %v951 = vpack.c.b16 %v895, %v893
      %v952 = vpack.c.b16 %v898, %v896
      %v953 = vpack.c.b16 %v899, %v897
      %v954 = vpack.c.b16 %v902, %v900
      %v955 = vpack.c.b16 %v903, %v901
      %v956 = vpack.c.b16 %v906, %v904
      %v957 = vpack.c.b16 %v907, %v905
      %v958 = vpack.c.b16 %v910, %v908
      %v959 = vpack.c.b16 %v911, %v909
      %v960 = vpack.c.b16 %v914, %v912
      %v961 = vpack.c.b16 %v915, %v913
      %v962 = vpack.c.b16 %v918, %v916
      %v963 = vpack.c.b16 %v919, %v917
      %v964 = vpack.c.b16 %v922, %v920
      %v965 = vpack.c.b16 %v923, %v921
      %v966 = vpack.c.b16 %v926, %v924
      %v967 = vpack.c.b16 %v927, %v925
      %v968 = vpack.c.b16 %v930, %v928
      %v969 = vpack.c.b16 %v931, %v929
      %v970 = vpack.c.b16 %v934, %v932
      %v971 = vpack.c.b16 %v935, %v933
      %v972 = vpack.c.b16 %v938, %v936
      %v973 = vpack.c.b16 %v939, %v937
      %v974 = vpack.c.b16 %v942, %v940
      %v975 = vpack.c.b16 %v943, %v941
      %1008 = vmatpush.bf16.msra.mxu0 %v958
      %1009 = vmatpush.bf16.msra.mxu0 %v956
      %1010 = vmatpush.bf16.msra.mxu0 %v954
      %1011 = vmatpush.bf16.msra.mxu0 %v952
      %1012 = vmatpush.bf16.msra.mxu0 %v950
      %1013 = vmatpush.bf16.msra.mxu0 %v948
      %1014 = vmatpush.bf16.msra.mxu0 %v946
      %1015 = vmatpush.bf16.msra.mxu0 %v944
      %1016 = vmatmul.bf16.gmra.mxu0 %v794
      %v1017 = vpop.f32.mrf.mxu0
      %v1018 = vadd.f32 %v844, %v1017
      %v1019 = vpop.f32.mrf.mxu0
      %v1020 = vadd.f32 %v844, %v1019
      %1021 = vmatmul.bf16.gmra.mxu0 %v796
      %v1022 = vpop.f32.mrf.mxu0
      %v1023 = vadd.f32 %v844, %v1022
      %v1024 = vpop.f32.mrf.mxu0
      %v1025 = vadd.f32 %v844, %v1024
      %1026 = vmatmul.bf16.gmra.mxu0 %v798
      %v1027 = vpop.f32.mrf.mxu0
      %v1028 = vadd.f32 %v844, %v1027
      %v1029 = vpop.f32.mrf.mxu0
      %v1030 = vadd.f32 %v844, %v1029
      %1031 = vmatmul.bf16.gmra.mxu0 %v800
      %v1032 = vpop.f32.mrf.mxu0
      %v1033 = vadd.f32 %v844, %v1032
      %v1034 = vpop.f32.mrf.mxu0
      %v1035 = vadd.f32 %v844, %v1034
      %1036 = vmatmul.bf16.gmra.mxu0 %v802
      %v1037 = vpop.f32.mrf.mxu0
      %v1038 = vadd.f32 %v844, %v1037
      %v1039 = vpop.f32.mrf.mxu0
      %v1040 = vadd.f32 %v844, %v1039
      %1041 = vmatmul.bf16.gmra.mxu0 %v804
      %v1042 = vpop.f32.mrf.mxu0
      %v1043 = vadd.f32 %v844, %v1042
      %v1044 = vpop.f32.mrf.mxu0
      %v1045 = vadd.f32 %v844, %v1044
      %1046 = vmatmul.bf16.gmra.mxu0 %v806
      %v1047 = vpop.f32.mrf.mxu0
      %v1048 = vadd.f32 %v844, %v1047
      %v1049 = vpop.f32.mrf.mxu0
      %v1050 = vadd.f32 %v844, %v1049
      %1051 = vmatmul.bf16.gmra.mxu0 %v808
      %v1052 = vpop.f32.mrf.mxu0
      %v1053 = vadd.f32 %v844, %v1052
      %v1054 = vpop.f32.mrf.mxu0
      %v1055 = vadd.f32 %v844, %v1054
      %1056 = vdwg.mxu0
      %1057 = vmatpush.bf16.msra.mxu0 %v974
      %1058 = vmatpush.bf16.msra.mxu0 %v972
      %1059 = vmatpush.bf16.msra.mxu0 %v970
      %1060 = vmatpush.bf16.msra.mxu0 %v968
      %1061 = vmatpush.bf16.msra.mxu0 %v966
      %1062 = vmatpush.bf16.msra.mxu0 %v964
      %1063 = vmatpush.bf16.msra.mxu0 %v962
      %1064 = vmatpush.bf16.msra.mxu0 %v960
      %1065 = vmatmul.bf16.gmra.mxu0 %v795
      %v1066 = vpop.f32.mrf.mxu0
      %v1067 = vadd.f32 %v1018, %v1066
      %v1068 = vpop.f32.mrf.mxu0
      %v1069 = vadd.f32 %v1020, %v1068
      %1070 = vmatmul.bf16.gmra.mxu0 %v797
      %v1071 = vpop.f32.mrf.mxu0
      %v1072 = vadd.f32 %v1023, %v1071
      %v1073 = vpop.f32.mrf.mxu0
      %v1074 = vadd.f32 %v1025, %v1073
      %1075 = vmatmul.bf16.gmra.mxu0 %v799
      %v1076 = vpop.f32.mrf.mxu0
      %v1077 = vadd.f32 %v1028, %v1076
      %v1078 = vpop.f32.mrf.mxu0
      %v1079 = vadd.f32 %v1030, %v1078
      %1080 = vmatmul.bf16.gmra.mxu0 %v801
      %v1081 = vpop.f32.mrf.mxu0
      %v1082 = vadd.f32 %v1033, %v1081
      %v1083 = vpop.f32.mrf.mxu0
      %v1084 = vadd.f32 %v1035, %v1083
      %1085 = vmatmul.bf16.gmra.mxu0 %v803
      %v1086 = vpop.f32.mrf.mxu0
      %v1087 = vadd.f32 %v1038, %v1086
      %v1088 = vpop.f32.mrf.mxu0
      %v1089 = vadd.f32 %v1040, %v1088
      %1090 = vmatmul.bf16.gmra.mxu0 %v805
      %v1091 = vpop.f32.mrf.mxu0
      %v1092 = vadd.f32 %v1043, %v1091
      %v1093 = vpop.f32.mrf.mxu0
      %v1094 = vadd.f32 %v1045, %v1093
      %1095 = vmatmul.bf16.gmra.mxu0 %v807
      %v1096 = vpop.f32.mrf.mxu0
      %v1097 = vadd.f32 %v1048, %v1096
      %v1098 = vpop.f32.mrf.mxu0
      %v1099 = vadd.f32 %v1050, %v1098
      %1100 = vmatmul.bf16.gmra.mxu0 %v809
      %v1101 = vpop.f32.mrf.mxu0
      %v1102 = vadd.f32 %v1053, %v1101
      %v1103 = vpop.f32.mrf.mxu0
      %v1104 = vadd.f32 %v1055, %v1103
      %1105 = vdwg.mxu0
      %1106 = vmatpush.bf16.msra.mxu0 %v959
      %1107 = vmatpush.bf16.msra.mxu0 %v957
      %1108 = vmatpush.bf16.msra.mxu0 %v955
      %1109 = vmatpush.bf16.msra.mxu0 %v953
      %1110 = vmatpush.bf16.msra.mxu0 %v951
      %1111 = vmatpush.bf16.msra.mxu0 %v949
      %1112 = vmatpush.bf16.msra.mxu0 %v947
      %1113 = vmatpush.bf16.msra.mxu0 %v945
      %1114 = vmatmul.bf16.gmra.mxu0 %v794
      %v1115 = vpop.f32.mrf.mxu0
      %v1116 = vadd.f32 %v845, %v1115
      %v1117 = vpop.f32.mrf.mxu0
      %v1118 = vadd.f32 %v845, %v1117
      %1119 = vmatmul.bf16.gmra.mxu0 %v796
      %v1120 = vpop.f32.mrf.mxu0
      %v1121 = vadd.f32 %v845, %v1120
      %v1122 = vpop.f32.mrf.mxu0
      %v1123 = vadd.f32 %v845, %v1122
      %1124 = vmatmul.bf16.gmra.mxu0 %v798
      %v1125 = vpop.f32.mrf.mxu0
      %v1126 = vadd.f32 %v845, %v1125
      %v1127 = vpop.f32.mrf.mxu0
      %v1128 = vadd.f32 %v845, %v1127
      %1129 = vmatmul.bf16.gmra.mxu0 %v800
      %v1130 = vpop.f32.mrf.mxu0
      %v1131 = vadd.f32 %v845, %v1130
      %v1132 = vpop.f32.mrf.mxu0
      %v1133 = vadd.f32 %v845, %v1132
      %1134 = vmatmul.bf16.gmra.mxu0 %v802
      %v1135 = vpop.f32.mrf.mxu0
      %v1136 = vadd.f32 %v845, %v1135
      %v1137 = vpop.f32.mrf.mxu0
      %v1138 = vadd.f32 %v845, %v1137
      %1139 = vmatmul.bf16.gmra.mxu0 %v804
      %v1140 = vpop.f32.mrf.mxu0
      %v1141 = vadd.f32 %v845, %v1140
      %v1142 = vpop.f32.mrf.mxu0
      %v1143 = vadd.f32 %v845, %v1142
      %1144 = vmatmul.bf16.gmra.mxu0 %v806
      %v1145 = vpop.f32.mrf.mxu0
      %v1146 = vadd.f32 %v845, %v1145
      %v1147 = vpop.f32.mrf.mxu0
      %v1148 = vadd.f32 %v845, %v1147
      %1149 = vmatmul.bf16.gmra.mxu0 %v808
      %v1150 = vpop.f32.mrf.mxu0
      %v1151 = vadd.f32 %v845, %v1150
      %v1152 = vpop.f32.mrf.mxu0
      %v1153 = vadd.f32 %v845, %v1152
      %1154 = vdwg.mxu0
      %1155 = vmatpush.bf16.msra.mxu0 %v975
      %1156 = vmatpush.bf16.msra.mxu0 %v973
      %1157 = vmatpush.bf16.msra.mxu0 %v971
      %1158 = vmatpush.bf16.msra.mxu0 %v969
      %1159 = vmatpush.bf16.msra.mxu0 %v967
      %1160 = vmatpush.bf16.msra.mxu0 %v965
      %1161 = vmatpush.bf16.msra.mxu0 %v963
      %1162 = vmatpush.bf16.msra.mxu0 %v961
      %1163 = vmatmul.bf16.gmra.mxu0 %v795
      %v1164 = vpop.f32.mrf.mxu0
      %v1165 = vadd.f32 %v1116, %v1164
      %v1166 = vpop.f32.mrf.mxu0
      %v1167 = vadd.f32 %v1118, %v1166
      %1168 = vmatmul.bf16.gmra.mxu0 %v797
      %v1169 = vpop.f32.mrf.mxu0
      %v1170 = vadd.f32 %v1121, %v1169
      %v1171 = vpop.f32.mrf.mxu0
      %v1172 = vadd.f32 %v1123, %v1171
      %1173 = vmatmul.bf16.gmra.mxu0 %v799
      %v1174 = vpop.f32.mrf.mxu0
      %v1175 = vadd.f32 %v1126, %v1174
      %v1176 = vpop.f32.mrf.mxu0
      %v1177 = vadd.f32 %v1128, %v1176
      %1178 = vmatmul.bf16.gmra.mxu0 %v801
      %v1179 = vpop.f32.mrf.mxu0
      %v1180 = vadd.f32 %v1131, %v1179
      %v1181 = vpop.f32.mrf.mxu0
      %v1182 = vadd.f32 %v1133, %v1181
      %1183 = vmatmul.bf16.gmra.mxu0 %v803
      %v1184 = vpop.f32.mrf.mxu0
      %v1185 = vadd.f32 %v1136, %v1184
      %v1186 = vpop.f32.mrf.mxu0
      %v1187 = vadd.f32 %v1138, %v1186
      %1188 = vmatmul.bf16.gmra.mxu0 %v805
      %v1189 = vpop.f32.mrf.mxu0
      %v1190 = vadd.f32 %v1141, %v1189
      %v1191 = vpop.f32.mrf.mxu0
      %v1192 = vadd.f32 %v1143, %v1191
      %1193 = vmatmul.bf16.gmra.mxu0 %v807
      %v1194 = vpop.f32.mrf.mxu0
      %v1195 = vadd.f32 %v1146, %v1194
      %v1196 = vpop.f32.mrf.mxu0
      %v1197 = vadd.f32 %v1148, %v1196
      %1198 = vmatmul.bf16.gmra.mxu0 %v809
      %v1199 = vpop.f32.mrf.mxu0
      %v1200 = vadd.f32 %v1151, %v1199
      %v1201 = vpop.f32.mrf.mxu0
      %v1202 = vadd.f32 %v1153, %v1201
      %1203 = vdwg.mxu0
      %v1204 = vmax.f32 %v1067, 0.0
      %v1205 = vmax.f32 %v1165, 0.0
      %v1206 = vmax.f32 %v1069, 0.0
      %v1207 = vmax.f32 %v1167, 0.0
      %v1208 = vmax.f32 %v1072, 0.0
      %v1209 = vmax.f32 %v1170, 0.0
      %v1210 = vmax.f32 %v1074, 0.0
      %v1211 = vmax.f32 %v1172, 0.0
      %v1212 = vmax.f32 %v1077, 0.0
      %v1213 = vmax.f32 %v1175, 0.0
      %v1214 = vmax.f32 %v1079, 0.0
      %v1215 = vmax.f32 %v1177, 0.0
      %v1216 = vmax.f32 %v1082, 0.0
      %v1217 = vmax.f32 %v1180, 0.0
      %v1218 = vmax.f32 %v1084, 0.0
      %v1219 = vmax.f32 %v1182, 0.0
      %v1220 = vmax.f32 %v1087, 0.0
      %v1221 = vmax.f32 %v1185, 0.0
      %v1222 = vmax.f32 %v1089, 0.0
      %v1223 = vmax.f32 %v1187, 0.0
      %v1224 = vmax.f32 %v1092, 0.0
      %v1225 = vmax.f32 %v1190, 0.0
      %v1226 = vmax.f32 %v1094, 0.0
      %v1227 = vmax.f32 %v1192, 0.0
      %v1228 = vmax.f32 %v1097, 0.0
      %v1229 = vmax.f32 %v1195, 0.0
      %v1230 = vmax.f32 %v1099, 0.0
      %v1231 = vmax.f32 %v1197, 0.0
      %v1232 = vmax.f32 %v1102, 0.0
      %v1233 = vmax.f32 %v1200, 0.0
      %v1234 = vmax.f32 %v1104, 0.0
      %v1235 = vmax.f32 %v1202, 0.0
      %v1236 = vpack.c.bf16 %v1206, %v1204
      %v1237 = vpack.c.bf16 %v1207, %v1205
      %v1238 = vpack.c.bf16 %v1210, %v1208
      %v1239 = vpack.c.bf16 %v1211, %v1209
      %v1240 = vpack.c.bf16 %v1214, %v1212
      %v1241 = vpack.c.bf16 %v1215, %v1213
      %v1242 = vpack.c.bf16 %v1218, %v1216
      %v1243 = vpack.c.bf16 %v1219, %v1217
      %v1244 = vpack.c.bf16 %v1222, %v1220
      %v1245 = vpack.c.bf16 %v1223, %v1221
      %v1246 = vpack.c.bf16 %v1226, %v1224
      %v1247 = vpack.c.bf16 %v1227, %v1225
      %v1248 = vpack.c.bf16 %v1230, %v1228
      %v1249 = vpack.c.bf16 %v1231, %v1229
      %v1250 = vpack.c.bf16 %v1234, %v1232
      %v1251 = vpack.c.bf16 %v1235, %v1233
      %v1252 = vld [vmem:[%s6] sm:$0xff]
      %v1253 = vld [vmem:[%s6 + $0x8] sm:$0xff]
      %v1254 = vld [vmem:[%s6 + $0x10] sm:$0xff]
      %v1255 = vld [vmem:[%s6 + $0x18] sm:$0xff]
      %v1256 = vld [vmem:[%s6 + $0x20] sm:$0xff]
      %v1257 = vld [vmem:[%s6 + $0x28] sm:$0xff]
      %v1258 = vld [vmem:[%s6 + $0x30] sm:$0xff]
      %v1259 = vld [vmem:[%s6 + $0x38] sm:$0xff]
      %v1260 = vld [vmem:[%s6 + $0x40] sm:$0xff]
      %v1261 = vld [vmem:[%s6 + $0x48] sm:$0xff]
      %v1262 = vld [vmem:[%s6 + $0x50] sm:$0xff]
      %v1263 = vld [vmem:[%s6 + $0x58] sm:$0xff]
      %v1264 = vld [vmem:[%s6 + $0x60] sm:$0xff]
      %v1265 = vld [vmem:[%s6 + $0x68] sm:$0xff]
      %v1266 = vld [vmem:[%s6 + $0x70] sm:$0xff]
      %v1267 = vld [vmem:[%s6 + $0x78] sm:$0xff]
      %v1268 = vld [vmem:[%s6 + $0x80] sm:$0xff]
      %v1269 = vld [vmem:[%s6 + $0x88] sm:$0xff]
      %v1270 = vld [vmem:[%s6 + $0x90] sm:$0xff]
      %v1271 = vld [vmem:[%s6 + $0x98] sm:$0xff]
      %v1272 = vld [vmem:[%s6 + $0xa0] sm:$0xff]
      %v1273 = vld [vmem:[%s6 + $0xa8] sm:$0xff]
      %v1274 = vld [vmem:[%s6 + $0xb0] sm:$0xff]
      %v1275 = vld [vmem:[%s6 + $0xb8] sm:$0xff]
      %v1276 = vld [vmem:[%s6 + $0xc0] sm:$0xff]
      %v1277 = vld [vmem:[%s6 + $0xc8] sm:$0xff]
      %v1278 = vld [vmem:[%s6 + $0xd0] sm:$0xff]
      %v1279 = vld [vmem:[%s6 + $0xd8] sm:$0xff]
      %v1280 = vld [vmem:[%s6 + $0xe0] sm:$0xff]
      %v1281 = vld [vmem:[%s6 + $0xe8] sm:$0xff]
      %v1282 = vld [vmem:[%s6 + $0xf0] sm:$0xff]
      %v1283 = vld [vmem:[%s6 + $0xf8] sm:$0xff]
      %v1284 = vld [vmem:[%s7] sm:$0x3]
      %v1286 = vperm.slane %v1284, 0
      %v1287 = vperm.slane %v1284, 1
      %v1322 = vunpack.c.l.b16 %v1252
      %v1323 = vunpack.c.h.b16 %v1252
      %v1324 = vunpack.c.l.b16 %v1253
      %v1325 = vunpack.c.h.b16 %v1253
      %v1326 = vunpack.c.l.b16 %v1254
      %v1327 = vunpack.c.h.b16 %v1254
      %v1328 = vunpack.c.l.b16 %v1255
      %v1329 = vunpack.c.h.b16 %v1255
      %v1330 = vunpack.c.l.b16 %v1256
      %v1331 = vunpack.c.h.b16 %v1256
      %v1332 = vunpack.c.l.b16 %v1257
      %v1333 = vunpack.c.h.b16 %v1257
      %v1334 = vunpack.c.l.b16 %v1258
      %v1335 = vunpack.c.h.b16 %v1258
      %v1336 = vunpack.c.l.b16 %v1259
      %v1337 = vunpack.c.h.b16 %v1259
      %v1338 = vunpack.c.l.b16 %v1260
      %v1339 = vunpack.c.h.b16 %v1260
      %v1340 = vunpack.c.l.b16 %v1261
      %v1341 = vunpack.c.h.b16 %v1261
      %v1342 = vunpack.c.l.b16 %v1262
      %v1343 = vunpack.c.h.b16 %v1262
      %v1344 = vunpack.c.l.b16 %v1263
      %v1345 = vunpack.c.h.b16 %v1263
      %v1346 = vunpack.c.l.b16 %v1264
      %v1347 = vunpack.c.h.b16 %v1264
      %v1348 = vunpack.c.l.b16 %v1265
      %v1349 = vunpack.c.h.b16 %v1265
      %v1350 = vunpack.c.l.b16 %v1266
      %v1351 = vunpack.c.h.b16 %v1266
      %v1352 = vunpack.c.l.b16 %v1267
      %v1353 = vunpack.c.h.b16 %v1267
      %v1354 = vunpack.c.l.b16 %v1268
      %v1355 = vunpack.c.h.b16 %v1268
      %v1356 = vunpack.c.l.b16 %v1269
      %v1357 = vunpack.c.h.b16 %v1269
      %v1358 = vunpack.c.l.b16 %v1270
      %v1359 = vunpack.c.h.b16 %v1270
      %v1360 = vunpack.c.l.b16 %v1271
      %v1361 = vunpack.c.h.b16 %v1271
      %v1362 = vunpack.c.l.b16 %v1272
      %v1363 = vunpack.c.h.b16 %v1272
      %v1364 = vunpack.c.l.b16 %v1273
      %v1365 = vunpack.c.h.b16 %v1273
      %v1366 = vunpack.c.l.b16 %v1274
      %v1367 = vunpack.c.h.b16 %v1274
      %v1368 = vunpack.c.l.b16 %v1275
      %v1369 = vunpack.c.h.b16 %v1275
      %v1370 = vunpack.c.l.b16 %v1276
      %v1371 = vunpack.c.h.b16 %v1276
      %v1372 = vunpack.c.l.b16 %v1277
      %v1373 = vunpack.c.h.b16 %v1277
      %v1374 = vunpack.c.l.b16 %v1278
      %v1375 = vunpack.c.h.b16 %v1278
      %v1376 = vunpack.c.l.b16 %v1279
      %v1377 = vunpack.c.h.b16 %v1279
      %v1378 = vunpack.c.l.b16 %v1280
      %v1379 = vunpack.c.h.b16 %v1280
      %v1380 = vunpack.c.l.b16 %v1281
      %v1381 = vunpack.c.h.b16 %v1281
      %v1382 = vunpack.c.l.b16 %v1282
      %v1383 = vunpack.c.h.b16 %v1282
      %v1384 = vunpack.c.l.b16 %v1283
      %v1385 = vunpack.c.h.b16 %v1283
      %v1386 = vpack.c.b16 %v1324, %v1322
      %v1387 = vpack.c.b16 %v1325, %v1323
      %v1388 = vpack.c.b16 %v1328, %v1326
      %v1389 = vpack.c.b16 %v1329, %v1327
      %v1390 = vpack.c.b16 %v1332, %v1330
      %v1391 = vpack.c.b16 %v1333, %v1331
      %v1392 = vpack.c.b16 %v1336, %v1334
      %v1393 = vpack.c.b16 %v1337, %v1335
      %v1394 = vpack.c.b16 %v1340, %v1338
      %v1395 = vpack.c.b16 %v1341, %v1339
      %v1396 = vpack.c.b16 %v1344, %v1342
      %v1397 = vpack.c.b16 %v1345, %v1343
      %v1398 = vpack.c.b16 %v1348, %v1346
      %v1399 = vpack.c.b16 %v1349, %v1347
      %v1400 = vpack.c.b16 %v1352, %v1350
      %v1401 = vpack.c.b16 %v1353, %v1351
      %v1402 = vpack.c.b16 %v1356, %v1354
      %v1403 = vpack.c.b16 %v1357, %v1355
      %v1404 = vpack.c.b16 %v1360, %v1358
      %v1405 = vpack.c.b16 %v1361, %v1359
      %v1406 = vpack.c.b16 %v1364, %v1362
      %v1407 = vpack.c.b16 %v1365, %v1363
      %v1408 = vpack.c.b16 %v1368, %v1366
      %v1409 = vpack.c.b16 %v1369, %v1367
      %v1410 = vpack.c.b16 %v1372, %v1370
      %v1411 = vpack.c.b16 %v1373, %v1371
      %v1412 = vpack.c.b16 %v1376, %v1374
      %v1413 = vpack.c.b16 %v1377, %v1375
      %v1414 = vpack.c.b16 %v1380, %v1378
      %v1415 = vpack.c.b16 %v1381, %v1379
      %v1416 = vpack.c.b16 %v1384, %v1382
      %v1417 = vpack.c.b16 %v1385, %v1383
      %1450 = vmatpush.bf16.msra.mxu0 %v1400
      %1451 = vmatpush.bf16.msra.mxu0 %v1398
      %1452 = vmatpush.bf16.msra.mxu0 %v1396
      %1453 = vmatpush.bf16.msra.mxu0 %v1394
      %1454 = vmatpush.bf16.msra.mxu0 %v1392
      %1455 = vmatpush.bf16.msra.mxu0 %v1390
      %1456 = vmatpush.bf16.msra.mxu0 %v1388
      %1457 = vmatpush.bf16.msra.mxu0 %v1386
      %1458 = vmatmul.bf16.gmra.mxu0 %v1236
      %v1459 = vpop.f32.mrf.mxu0
      %v1460 = vadd.f32 %v1286, %v1459
      %v1461 = vpop.f32.mrf.mxu0
      %v1462 = vadd.f32 %v1286, %v1461
      %1463 = vmatmul.bf16.gmra.mxu0 %v1238
      %v1464 = vpop.f32.mrf.mxu0
      %v1465 = vadd.f32 %v1286, %v1464
      %v1466 = vpop.f32.mrf.mxu0
      %v1467 = vadd.f32 %v1286, %v1466
      %1468 = vmatmul.bf16.gmra.mxu0 %v1240
      %v1469 = vpop.f32.mrf.mxu0
      %v1470 = vadd.f32 %v1286, %v1469
      %v1471 = vpop.f32.mrf.mxu0
      %v1472 = vadd.f32 %v1286, %v1471
      %1473 = vmatmul.bf16.gmra.mxu0 %v1242
      %v1474 = vpop.f32.mrf.mxu0
      %v1475 = vadd.f32 %v1286, %v1474
      %v1476 = vpop.f32.mrf.mxu0
      %v1477 = vadd.f32 %v1286, %v1476
      %1478 = vmatmul.bf16.gmra.mxu0 %v1244
      %v1479 = vpop.f32.mrf.mxu0
      %v1480 = vadd.f32 %v1286, %v1479
      %v1481 = vpop.f32.mrf.mxu0
      %v1482 = vadd.f32 %v1286, %v1481
      %1483 = vmatmul.bf16.gmra.mxu0 %v1246
      %v1484 = vpop.f32.mrf.mxu0
      %v1485 = vadd.f32 %v1286, %v1484
      %v1486 = vpop.f32.mrf.mxu0
      %v1487 = vadd.f32 %v1286, %v1486
      %1488 = vmatmul.bf16.gmra.mxu0 %v1248
      %v1489 = vpop.f32.mrf.mxu0
      %v1490 = vadd.f32 %v1286, %v1489
      %v1491 = vpop.f32.mrf.mxu0
      %v1492 = vadd.f32 %v1286, %v1491
      %1493 = vmatmul.bf16.gmra.mxu0 %v1250
      %v1494 = vpop.f32.mrf.mxu0
      %v1495 = vadd.f32 %v1286, %v1494
      %v1496 = vpop.f32.mrf.mxu0
      %v1497 = vadd.f32 %v1286, %v1496
      %1498 = vdwg.mxu0
      %1499 = vmatpush.bf16.msra.mxu0 %v1416
      %1500 = vmatpush.bf16.msra.mxu0 %v1414
      %1501 = vmatpush.bf16.msra.mxu0 %v1412
      %1502 = vmatpush.bf16.msra.mxu0 %v1410
      %1503 = vmatpush.bf16.msra.mxu0 %v1408
      %1504 = vmatpush.bf16.msra.mxu0 %v1406
      %1505 = vmatpush.bf16.msra.mxu0 %v1404
      %1506 = vmatpush.bf16.msra.mxu0 %v1402
      %1507 = vmatmul.bf16.gmra.mxu0 %v1237
      %v1508 = vpop.f32.mrf.mxu0
      %v1509 = vadd.f32 %v1460, %v1508
      %v1510 = vpop.f32.mrf.mxu0
      %v1511 = vadd.f32 %v1462, %v1510
      %1512 = vmatmul.bf16.gmra.mxu0 %v1239
      %v1513 = vpop.f32.mrf.mxu0
      %v1514 = vadd.f32 %v1465, %v1513
      %v1515 = vpop.f32.mrf.mxu0
      %v1516 = vadd.f32 %v1467, %v1515
      %1517 = vmatmul.bf16.gmra.mxu0 %v1241
      %v1518 = vpop.f32.mrf.mxu0
      %v1519 = vadd.f32 %v1470, %v1518
      %v1520 = vpop.f32.mrf.mxu0
      %v1521 = vadd.f32 %v1472, %v1520
      %1522 = vmatmul.bf16.gmra.mxu0 %v1243
      %v1523 = vpop.f32.mrf.mxu0
      %v1524 = vadd.f32 %v1475, %v1523
      %v1525 = vpop.f32.mrf.mxu0
      %v1526 = vadd.f32 %v1477, %v1525
      %1527 = vmatmul.bf16.gmra.mxu0 %v1245
      %v1528 = vpop.f32.mrf.mxu0
      %v1529 = vadd.f32 %v1480, %v1528
      %v1530 = vpop.f32.mrf.mxu0
      %v1531 = vadd.f32 %v1482, %v1530
      %1532 = vmatmul.bf16.gmra.mxu0 %v1247
      %v1533 = vpop.f32.mrf.mxu0
      %v1534 = vadd.f32 %v1485, %v1533
      %v1535 = vpop.f32.mrf.mxu0
      %v1536 = vadd.f32 %v1487, %v1535
      %1537 = vmatmul.bf16.gmra.mxu0 %v1249
      %v1538 = vpop.f32.mrf.mxu0
      %v1539 = vadd.f32 %v1490, %v1538
      %v1540 = vpop.f32.mrf.mxu0
      %v1541 = vadd.f32 %v1492, %v1540
      %1542 = vmatmul.bf16.gmra.mxu0 %v1251
      %v1543 = vpop.f32.mrf.mxu0
      %v1544 = vadd.f32 %v1495, %v1543
      %v1545 = vpop.f32.mrf.mxu0
      %v1546 = vadd.f32 %v1497, %v1545
      %1547 = vdwg.mxu0
      %1548 = vmatpush.bf16.msra.mxu0 %v1401
      %1549 = vmatpush.bf16.msra.mxu0 %v1399
      %1550 = vmatpush.bf16.msra.mxu0 %v1397
      %1551 = vmatpush.bf16.msra.mxu0 %v1395
      %1552 = vmatpush.bf16.msra.mxu0 %v1393
      %1553 = vmatpush.bf16.msra.mxu0 %v1391
      %1554 = vmatpush.bf16.msra.mxu0 %v1389
      %1555 = vmatpush.bf16.msra.mxu0 %v1387
      %1556 = vmatmul.bf16.gmra.mxu0 %v1236
      %v1557 = vpop.f32.mrf.mxu0
      %v1558 = vadd.f32 %v1287, %v1557
      %v1559 = vpop.f32.mrf.mxu0
      %v1560 = vadd.f32 %v1287, %v1559
      %1561 = vmatmul.bf16.gmra.mxu0 %v1238
      %v1562 = vpop.f32.mrf.mxu0
      %v1563 = vadd.f32 %v1287, %v1562
      %v1564 = vpop.f32.mrf.mxu0
      %v1565 = vadd.f32 %v1287, %v1564
      %1566 = vmatmul.bf16.gmra.mxu0 %v1240
      %v1567 = vpop.f32.mrf.mxu0
      %v1568 = vadd.f32 %v1287, %v1567
      %v1569 = vpop.f32.mrf.mxu0
      %v1570 = vadd.f32 %v1287, %v1569
      %1571 = vmatmul.bf16.gmra.mxu0 %v1242
      %v1572 = vpop.f32.mrf.mxu0
      %v1573 = vadd.f32 %v1287, %v1572
      %v1574 = vpop.f32.mrf.mxu0
      %v1575 = vadd.f32 %v1287, %v1574
      %1576 = vmatmul.bf16.gmra.mxu0 %v1244
      %v1577 = vpop.f32.mrf.mxu0
      %v1578 = vadd.f32 %v1287, %v1577
      %v1579 = vpop.f32.mrf.mxu0
      %v1580 = vadd.f32 %v1287, %v1579
      %1581 = vmatmul.bf16.gmra.mxu0 %v1246
      %v1582 = vpop.f32.mrf.mxu0
      %v1583 = vadd.f32 %v1287, %v1582
      %v1584 = vpop.f32.mrf.mxu0
      %v1585 = vadd.f32 %v1287, %v1584
      %1586 = vmatmul.bf16.gmra.mxu0 %v1248
      %v1587 = vpop.f32.mrf.mxu0
      %v1588 = vadd.f32 %v1287, %v1587
      %v1589 = vpop.f32.mrf.mxu0
      %v1590 = vadd.f32 %v1287, %v1589
      %1591 = vmatmul.bf16.gmra.mxu0 %v1250
      %v1592 = vpop.f32.mrf.mxu0
      %v1593 = vadd.f32 %v1287, %v1592
      %v1594 = vpop.f32.mrf.mxu0
      %v1595 = vadd.f32 %v1287, %v1594
      %1596 = vdwg.mxu0
      %1597 = vmatpush.bf16.msra.mxu0 %v1417
      %1598 = vmatpush.bf16.msra.mxu0 %v1415
      %1599 = vmatpush.bf16.msra.mxu0 %v1413
      %1600 = vmatpush.bf16.msra.mxu0 %v1411
      %1601 = vmatpush.bf16.msra.mxu0 %v1409
      %1602 = vmatpush.bf16.msra.mxu0 %v1407
      %1603 = vmatpush.bf16.msra.mxu0 %v1405
      %1604 = vmatpush.bf16.msra.mxu0 %v1403
      %1605 = vmatmul.bf16.gmra.mxu0 %v1237
      %v1606 = vpop.f32.mrf.mxu0
      %v1607 = vadd.f32 %v1558, %v1606
      %v1608 = vpop.f32.mrf.mxu0
      %v1609 = vadd.f32 %v1560, %v1608
      %1610 = vmatmul.bf16.gmra.mxu0 %v1239
      %v1611 = vpop.f32.mrf.mxu0
      %v1612 = vadd.f32 %v1563, %v1611
      %v1613 = vpop.f32.mrf.mxu0
      %v1614 = vadd.f32 %v1565, %v1613
      %1615 = vmatmul.bf16.gmra.mxu0 %v1241
      %v1616 = vpop.f32.mrf.mxu0
      %v1617 = vadd.f32 %v1568, %v1616
      %v1618 = vpop.f32.mrf.mxu0
      %v1619 = vadd.f32 %v1570, %v1618
      %1620 = vmatmul.bf16.gmra.mxu0 %v1243
      %v1621 = vpop.f32.mrf.mxu0
      %v1622 = vadd.f32 %v1573, %v1621
      %v1623 = vpop.f32.mrf.mxu0
      %v1624 = vadd.f32 %v1575, %v1623
      %1625 = vmatmul.bf16.gmra.mxu0 %v1245
      %v1626 = vpop.f32.mrf.mxu0
      %v1627 = vadd.f32 %v1578, %v1626
      %v1628 = vpop.f32.mrf.mxu0
      %v1629 = vadd.f32 %v1580, %v1628
      %1630 = vmatmul.bf16.gmra.mxu0 %v1247
      %v1631 = vpop.f32.mrf.mxu0
      %v1632 = vadd.f32 %v1583, %v1631
      %v1633 = vpop.f32.mrf.mxu0
      %v1634 = vadd.f32 %v1585, %v1633
      %1635 = vmatmul.bf16.gmra.mxu0 %v1249
      %v1636 = vpop.f32.mrf.mxu0
      %v1637 = vadd.f32 %v1588, %v1636
      %v1638 = vpop.f32.mrf.mxu0
      %v1639 = vadd.f32 %v1590, %v1638
      %1640 = vmatmul.bf16.gmra.mxu0 %v1251
      %v1641 = vpop.f32.mrf.mxu0
      %v1642 = vadd.f32 %v1593, %v1641
      %v1643 = vpop.f32.mrf.mxu0
      %v1644 = vadd.f32 %v1595, %v1643
      %1645 = vdwg.mxu0
      %v1646 = vmax.f32 %v1509, 0.0
      %v1647 = vmax.f32 %v1607, 0.0
      %v1648 = vmax.f32 %v1511, 0.0
      %v1649 = vmax.f32 %v1609, 0.0
      %v1650 = vmax.f32 %v1514, 0.0
      %v1651 = vmax.f32 %v1612, 0.0
      %v1652 = vmax.f32 %v1516, 0.0
      %v1653 = vmax.f32 %v1614, 0.0
      %v1654 = vmax.f32 %v1519, 0.0
      %v1655 = vmax.f32 %v1617, 0.0
      %v1656 = vmax.f32 %v1521, 0.0
      %v1657 = vmax.f32 %v1619, 0.0
      %v1658 = vmax.f32 %v1524, 0.0
      %v1659 = vmax.f32 %v1622, 0.0
      %v1660 = vmax.f32 %v1526, 0.0
      %v1661 = vmax.f32 %v1624, 0.0
      %v1662 = vmax.f32 %v1529, 0.0
      %v1663 = vmax.f32 %v1627, 0.0
      %v1664 = vmax.f32 %v1531, 0.0
      %v1665 = vmax.f32 %v1629, 0.0
      %v1666 = vmax.f32 %v1534, 0.0
      %v1667 = vmax.f32 %v1632, 0.0
      %v1668 = vmax.f32 %v1536, 0.0
      %v1669 = vmax.f32 %v1634, 0.0
      %v1670 = vmax.f32 %v1539, 0.0
      %v1671 = vmax.f32 %v1637, 0.0
      %v1672 = vmax.f32 %v1541, 0.0
      %v1673 = vmax.f32 %v1639, 0.0
      %v1674 = vmax.f32 %v1544, 0.0
      %v1675 = vmax.f32 %v1642, 0.0
      %v1676 = vmax.f32 %v1546, 0.0
      %v1677 = vmax.f32 %v1644, 0.0
      %v1678 = vpack.c.bf16 %v1648, %v1646
      %v1679 = vpack.c.bf16 %v1649, %v1647
      %v1680 = vpack.c.bf16 %v1652, %v1650
      %v1681 = vpack.c.bf16 %v1653, %v1651
      %v1682 = vpack.c.bf16 %v1656, %v1654
      %v1683 = vpack.c.bf16 %v1657, %v1655
      %v1684 = vpack.c.bf16 %v1660, %v1658
      %v1685 = vpack.c.bf16 %v1661, %v1659
      %v1686 = vpack.c.bf16 %v1664, %v1662
      %v1687 = vpack.c.bf16 %v1665, %v1663
      %v1688 = vpack.c.bf16 %v1668, %v1666
      %v1689 = vpack.c.bf16 %v1669, %v1667
      %v1690 = vpack.c.bf16 %v1672, %v1670
      %v1691 = vpack.c.bf16 %v1673, %v1671
      %v1692 = vpack.c.bf16 %v1676, %v1674
      %v1693 = vpack.c.bf16 %v1677, %v1675
      %v1694 = vld [vmem:[%s8] sm:$0xff]
      %v1695 = vld [vmem:[%s8 + $0x8] sm:$0xff]
      %v1696 = vld [vmem:[%s8 + $0x10] sm:$0xff]
      %v1697 = vld [vmem:[%s8 + $0x18] sm:$0xff]
      %v1698 = vld [vmem:[%s8 + $0x20] sm:$0xff]
      %v1699 = vld [vmem:[%s8 + $0x28] sm:$0xff]
      %v1700 = vld [vmem:[%s8 + $0x30] sm:$0xff]
      %v1701 = vld [vmem:[%s8 + $0x38] sm:$0xff]
      %v1702 = vld [vmem:[%s8 + $0x40] sm:$0xff]
      %v1703 = vld [vmem:[%s8 + $0x48] sm:$0xff]
      %v1704 = vld [vmem:[%s8 + $0x50] sm:$0xff]
      %v1705 = vld [vmem:[%s8 + $0x58] sm:$0xff]
      %v1706 = vld [vmem:[%s8 + $0x60] sm:$0xff]
      %v1707 = vld [vmem:[%s8 + $0x68] sm:$0xff]
      %v1708 = vld [vmem:[%s8 + $0x70] sm:$0xff]
      %v1709 = vld [vmem:[%s8 + $0x78] sm:$0xff]
      %v1710 = vld [vmem:[%s8 + $0x80] sm:$0xff]
      %v1711 = vld [vmem:[%s8 + $0x88] sm:$0xff]
      %v1712 = vld [vmem:[%s8 + $0x90] sm:$0xff]
      %v1713 = vld [vmem:[%s8 + $0x98] sm:$0xff]
      %v1714 = vld [vmem:[%s8 + $0xa0] sm:$0xff]
      %v1715 = vld [vmem:[%s8 + $0xa8] sm:$0xff]
      %v1716 = vld [vmem:[%s8 + $0xb0] sm:$0xff]
      %v1717 = vld [vmem:[%s8 + $0xb8] sm:$0xff]
      %v1718 = vld [vmem:[%s8 + $0xc0] sm:$0xff]
      %v1719 = vld [vmem:[%s8 + $0xc8] sm:$0xff]
      %v1720 = vld [vmem:[%s8 + $0xd0] sm:$0xff]
      %v1721 = vld [vmem:[%s8 + $0xd8] sm:$0xff]
      %v1722 = vld [vmem:[%s8 + $0xe0] sm:$0xff]
      %v1723 = vld [vmem:[%s8 + $0xe8] sm:$0xff]
      %v1724 = vld [vmem:[%s8 + $0xf0] sm:$0xff]
      %v1725 = vld [vmem:[%s8 + $0xf8] sm:$0xff]
      %v1726 = vld [vmem:[%s9] sm:$0x3]
      %v1728 = vperm.slane %v1726, 0
      %v1729 = vperm.slane %v1726, 1
      %v1764 = vunpack.c.l.b16 %v1694
      %v1765 = vunpack.c.h.b16 %v1694
      %v1766 = vunpack.c.l.b16 %v1695
      %v1767 = vunpack.c.h.b16 %v1695
      %v1768 = vunpack.c.l.b16 %v1696
      %v1769 = vunpack.c.h.b16 %v1696
      %v1770 = vunpack.c.l.b16 %v1697
      %v1771 = vunpack.c.h.b16 %v1697
      %v1772 = vunpack.c.l.b16 %v1698
      %v1773 = vunpack.c.h.b16 %v1698
      %v1774 = vunpack.c.l.b16 %v1699
      %v1775 = vunpack.c.h.b16 %v1699
      %v1776 = vunpack.c.l.b16 %v1700
      %v1777 = vunpack.c.h.b16 %v1700
      %v1778 = vunpack.c.l.b16 %v1701
      %v1779 = vunpack.c.h.b16 %v1701
      %v1780 = vunpack.c.l.b16 %v1702
      %v1781 = vunpack.c.h.b16 %v1702
      %v1782 = vunpack.c.l.b16 %v1703
      %v1783 = vunpack.c.h.b16 %v1703
      %v1784 = vunpack.c.l.b16 %v1704
      %v1785 = vunpack.c.h.b16 %v1704
      %v1786 = vunpack.c.l.b16 %v1705
      %v1787 = vunpack.c.h.b16 %v1705
      %v1788 = vunpack.c.l.b16 %v1706
      %v1789 = vunpack.c.h.b16 %v1706
      %v1790 = vunpack.c.l.b16 %v1707
      %v1791 = vunpack.c.h.b16 %v1707
      %v1792 = vunpack.c.l.b16 %v1708
      %v1793 = vunpack.c.h.b16 %v1708
      %v1794 = vunpack.c.l.b16 %v1709
      %v1795 = vunpack.c.h.b16 %v1709
      %v1796 = vunpack.c.l.b16 %v1710
      %v1797 = vunpack.c.h.b16 %v1710
      %v1798 = vunpack.c.l.b16 %v1711
      %v1799 = vunpack.c.h.b16 %v1711
      %v1800 = vunpack.c.l.b16 %v1712
      %v1801 = vunpack.c.h.b16 %v1712
      %v1802 = vunpack.c.l.b16 %v1713
      %v1803 = vunpack.c.h.b16 %v1713
      %v1804 = vunpack.c.l.b16 %v1714
      %v1805 = vunpack.c.h.b16 %v1714
      %v1806 = vunpack.c.l.b16 %v1715
      %v1807 = vunpack.c.h.b16 %v1715
      %v1808 = vunpack.c.l.b16 %v1716
      %v1809 = vunpack.c.h.b16 %v1716
      %v1810 = vunpack.c.l.b16 %v1717
      %v1811 = vunpack.c.h.b16 %v1717
      %v1812 = vunpack.c.l.b16 %v1718
      %v1813 = vunpack.c.h.b16 %v1718
      %v1814 = vunpack.c.l.b16 %v1719
      %v1815 = vunpack.c.h.b16 %v1719
      %v1816 = vunpack.c.l.b16 %v1720
      %v1817 = vunpack.c.h.b16 %v1720
      %v1818 = vunpack.c.l.b16 %v1721
      %v1819 = vunpack.c.h.b16 %v1721
      %v1820 = vunpack.c.l.b16 %v1722
      %v1821 = vunpack.c.h.b16 %v1722
      %v1822 = vunpack.c.l.b16 %v1723
      %v1823 = vunpack.c.h.b16 %v1723
      %v1824 = vunpack.c.l.b16 %v1724
      %v1825 = vunpack.c.h.b16 %v1724
      %v1826 = vunpack.c.l.b16 %v1725
      %v1827 = vunpack.c.h.b16 %v1725
      %v1828 = vpack.c.b16 %v1766, %v1764
      %v1829 = vpack.c.b16 %v1767, %v1765
      %v1830 = vpack.c.b16 %v1770, %v1768
      %v1831 = vpack.c.b16 %v1771, %v1769
      %v1832 = vpack.c.b16 %v1774, %v1772
      %v1833 = vpack.c.b16 %v1775, %v1773
      %v1834 = vpack.c.b16 %v1778, %v1776
      %v1835 = vpack.c.b16 %v1779, %v1777
      %v1836 = vpack.c.b16 %v1782, %v1780
      %v1837 = vpack.c.b16 %v1783, %v1781
      %v1838 = vpack.c.b16 %v1786, %v1784
      %v1839 = vpack.c.b16 %v1787, %v1785
      %v1840 = vpack.c.b16 %v1790, %v1788
      %v1841 = vpack.c.b16 %v1791, %v1789
      %v1842 = vpack.c.b16 %v1794, %v1792
      %v1843 = vpack.c.b16 %v1795, %v1793
      %v1844 = vpack.c.b16 %v1798, %v1796
      %v1845 = vpack.c.b16 %v1799, %v1797
      %v1846 = vpack.c.b16 %v1802, %v1800
      %v1847 = vpack.c.b16 %v1803, %v1801
      %v1848 = vpack.c.b16 %v1806, %v1804
      %v1849 = vpack.c.b16 %v1807, %v1805
      %v1850 = vpack.c.b16 %v1810, %v1808
      %v1851 = vpack.c.b16 %v1811, %v1809
      %v1852 = vpack.c.b16 %v1814, %v1812
      %v1853 = vpack.c.b16 %v1815, %v1813
      %v1854 = vpack.c.b16 %v1818, %v1816
      %v1855 = vpack.c.b16 %v1819, %v1817
      %v1856 = vpack.c.b16 %v1822, %v1820
      %v1857 = vpack.c.b16 %v1823, %v1821
      %v1858 = vpack.c.b16 %v1826, %v1824
      %v1859 = vpack.c.b16 %v1827, %v1825
      %1892 = vmatpush.bf16.msra.mxu0 %v1842
      %1893 = vmatpush.bf16.msra.mxu0 %v1840
      %1894 = vmatpush.bf16.msra.mxu0 %v1838
      %1895 = vmatpush.bf16.msra.mxu0 %v1836
      %1896 = vmatpush.bf16.msra.mxu0 %v1834
      %1897 = vmatpush.bf16.msra.mxu0 %v1832
      %1898 = vmatpush.bf16.msra.mxu0 %v1830
      %1899 = vmatpush.bf16.msra.mxu0 %v1828
      %1900 = vmatmul.bf16.gmra.mxu0 %v1678
      %v1901 = vpop.f32.mrf.mxu0
      %v1902 = vadd.f32 %v1728, %v1901
      %v1903 = vpop.f32.mrf.mxu0
      %v1904 = vadd.f32 %v1728, %v1903
      %1905 = vmatmul.bf16.gmra.mxu0 %v1680
      %v1906 = vpop.f32.mrf.mxu0
      %v1907 = vadd.f32 %v1728, %v1906
      %v1908 = vpop.f32.mrf.mxu0
      %v1909 = vadd.f32 %v1728, %v1908
      %1910 = vmatmul.bf16.gmra.mxu0 %v1682
      %v1911 = vpop.f32.mrf.mxu0
      %v1912 = vadd.f32 %v1728, %v1911
      %v1913 = vpop.f32.mrf.mxu0
      %v1914 = vadd.f32 %v1728, %v1913
      %1915 = vmatmul.bf16.gmra.mxu0 %v1684
      %v1916 = vpop.f32.mrf.mxu0
      %v1917 = vadd.f32 %v1728, %v1916
      %v1918 = vpop.f32.mrf.mxu0
      %v1919 = vadd.f32 %v1728, %v1918
      %1920 = vmatmul.bf16.gmra.mxu0 %v1686
      %v1921 = vpop.f32.mrf.mxu0
      %v1922 = vadd.f32 %v1728, %v1921
      %v1923 = vpop.f32.mrf.mxu0
      %v1924 = vadd.f32 %v1728, %v1923
      %1925 = vmatmul.bf16.gmra.mxu0 %v1688
      %v1926 = vpop.f32.mrf.mxu0
      %v1927 = vadd.f32 %v1728, %v1926
      %v1928 = vpop.f32.mrf.mxu0
      %v1929 = vadd.f32 %v1728, %v1928
      %1930 = vmatmul.bf16.gmra.mxu0 %v1690
      %v1931 = vpop.f32.mrf.mxu0
      %v1932 = vadd.f32 %v1728, %v1931
      %v1933 = vpop.f32.mrf.mxu0
      %v1934 = vadd.f32 %v1728, %v1933
      %1935 = vmatmul.bf16.gmra.mxu0 %v1692
      %v1936 = vpop.f32.mrf.mxu0
      %v1937 = vadd.f32 %v1728, %v1936
      %v1938 = vpop.f32.mrf.mxu0
      %v1939 = vadd.f32 %v1728, %v1938
      %1940 = vdwg.mxu0
      %1941 = vmatpush.bf16.msra.mxu0 %v1858
      %1942 = vmatpush.bf16.msra.mxu0 %v1856
      %1943 = vmatpush.bf16.msra.mxu0 %v1854
      %1944 = vmatpush.bf16.msra.mxu0 %v1852
      %1945 = vmatpush.bf16.msra.mxu0 %v1850
      %1946 = vmatpush.bf16.msra.mxu0 %v1848
      %1947 = vmatpush.bf16.msra.mxu0 %v1846
      %1948 = vmatpush.bf16.msra.mxu0 %v1844
      %1949 = vmatmul.bf16.gmra.mxu0 %v1679
      %v1950 = vpop.f32.mrf.mxu0
      %v1951 = vadd.f32 %v1902, %v1950
      %v1952 = vpop.f32.mrf.mxu0
      %v1953 = vadd.f32 %v1904, %v1952
      %1954 = vmatmul.bf16.gmra.mxu0 %v1681
      %v1955 = vpop.f32.mrf.mxu0
      %v1956 = vadd.f32 %v1907, %v1955
      %v1957 = vpop.f32.mrf.mxu0
      %v1958 = vadd.f32 %v1909, %v1957
      %1959 = vmatmul.bf16.gmra.mxu0 %v1683
      %v1960 = vpop.f32.mrf.mxu0
      %v1961 = vadd.f32 %v1912, %v1960
      %v1962 = vpop.f32.mrf.mxu0
      %v1963 = vadd.f32 %v1914, %v1962
      %1964 = vmatmul.bf16.gmra.mxu0 %v1685
      %v1965 = vpop.f32.mrf.mxu0
      %v1966 = vadd.f32 %v1917, %v1965
      %v1967 = vpop.f32.mrf.mxu0
      %v1968 = vadd.f32 %v1919, %v1967
      %1969 = vmatmul.bf16.gmra.mxu0 %v1687
      %v1970 = vpop.f32.mrf.mxu0
      %v1971 = vadd.f32 %v1922, %v1970
      %v1972 = vpop.f32.mrf.mxu0
      %v1973 = vadd.f32 %v1924, %v1972
      %1974 = vmatmul.bf16.gmra.mxu0 %v1689
      %v1975 = vpop.f32.mrf.mxu0
      %v1976 = vadd.f32 %v1927, %v1975
      %v1977 = vpop.f32.mrf.mxu0
      %v1978 = vadd.f32 %v1929, %v1977
      %1979 = vmatmul.bf16.gmra.mxu0 %v1691
      %v1980 = vpop.f32.mrf.mxu0
      %v1981 = vadd.f32 %v1932, %v1980
      %v1982 = vpop.f32.mrf.mxu0
      %v1983 = vadd.f32 %v1934, %v1982
      %1984 = vmatmul.bf16.gmra.mxu0 %v1693
      %v1985 = vpop.f32.mrf.mxu0
      %v1986 = vadd.f32 %v1937, %v1985
      %v1987 = vpop.f32.mrf.mxu0
      %v1988 = vadd.f32 %v1939, %v1987
      %1989 = vdwg.mxu0
      %1990 = vmatpush.bf16.msra.mxu0 %v1843
      %1991 = vmatpush.bf16.msra.mxu0 %v1841
      %1992 = vmatpush.bf16.msra.mxu0 %v1839
      %1993 = vmatpush.bf16.msra.mxu0 %v1837
      %1994 = vmatpush.bf16.msra.mxu0 %v1835
      %1995 = vmatpush.bf16.msra.mxu0 %v1833
      %1996 = vmatpush.bf16.msra.mxu0 %v1831
      %1997 = vmatpush.bf16.msra.mxu0 %v1829
      %1998 = vmatmul.bf16.gmra.mxu0 %v1678
      %v1999 = vpop.f32.mrf.mxu0
      %v2000 = vadd.f32 %v1729, %v1999
      %v2001 = vpop.f32.mrf.mxu0
      %v2002 = vadd.f32 %v1729, %v2001
      %2003 = vmatmul.bf16.gmra.mxu0 %v1680
      %v2004 = vpop.f32.mrf.mxu0
      %v2005 = vadd.f32 %v1729, %v2004
      %v2006 = vpop.f32.mrf.mxu0
      %v2007 = vadd.f32 %v1729, %v2006
      %2008 = vmatmul.bf16.gmra.mxu0 %v1682
      %v2009 = vpop.f32.mrf.mxu0
      %v2010 = vadd.f32 %v1729, %v2009
      %v2011 = vpop.f32.mrf.mxu0
      %v2012 = vadd.f32 %v1729, %v2011
      %2013 = vmatmul.bf16.gmra.mxu0 %v1684
      %v2014 = vpop.f32.mrf.mxu0
      %v2015 = vadd.f32 %v1729, %v2014
      %v2016 = vpop.f32.mrf.mxu0
      %v2017 = vadd.f32 %v1729, %v2016
      %2018 = vmatmul.bf16.gmra.mxu0 %v1686
      %v2019 = vpop.f32.mrf.mxu0
      %v2020 = vadd.f32 %v1729, %v2019
      %v2021 = vpop.f32.mrf.mxu0
      %v2022 = vadd.f32 %v1729, %v2021
      %2023 = vmatmul.bf16.gmra.mxu0 %v1688
      %v2024 = vpop.f32.mrf.mxu0
      %v2025 = vadd.f32 %v1729, %v2024
      %v2026 = vpop.f32.mrf.mxu0
      %v2027 = vadd.f32 %v1729, %v2026
      %2028 = vmatmul.bf16.gmra.mxu0 %v1690
      %v2029 = vpop.f32.mrf.mxu0
      %v2030 = vadd.f32 %v1729, %v2029
      %v2031 = vpop.f32.mrf.mxu0
      %v2032 = vadd.f32 %v1729, %v2031
      %2033 = vmatmul.bf16.gmra.mxu0 %v1692
      %v2034 = vpop.f32.mrf.mxu0
      %v2035 = vadd.f32 %v1729, %v2034
      %v2036 = vpop.f32.mrf.mxu0
      %v2037 = vadd.f32 %v1729, %v2036
      %2038 = vdwg.mxu0
      %2039 = vmatpush.bf16.msra.mxu0 %v1859
      %2040 = vmatpush.bf16.msra.mxu0 %v1857
      %2041 = vmatpush.bf16.msra.mxu0 %v1855
      %2042 = vmatpush.bf16.msra.mxu0 %v1853
      %2043 = vmatpush.bf16.msra.mxu0 %v1851
      %2044 = vmatpush.bf16.msra.mxu0 %v1849
      %2045 = vmatpush.bf16.msra.mxu0 %v1847
      %2046 = vmatpush.bf16.msra.mxu0 %v1845
      %2047 = vmatmul.bf16.gmra.mxu0 %v1679
      %v2048 = vpop.f32.mrf.mxu0
      %v2049 = vadd.f32 %v2000, %v2048
      %v2050 = vpop.f32.mrf.mxu0
      %v2051 = vadd.f32 %v2002, %v2050
      %2052 = vmatmul.bf16.gmra.mxu0 %v1681
      %v2053 = vpop.f32.mrf.mxu0
      %v2054 = vadd.f32 %v2005, %v2053
      %v2055 = vpop.f32.mrf.mxu0
      %v2056 = vadd.f32 %v2007, %v2055
      %2057 = vmatmul.bf16.gmra.mxu0 %v1683
      %v2058 = vpop.f32.mrf.mxu0
      %v2059 = vadd.f32 %v2010, %v2058
      %v2060 = vpop.f32.mrf.mxu0
      %v2061 = vadd.f32 %v2012, %v2060
      %2062 = vmatmul.bf16.gmra.mxu0 %v1685
      %v2063 = vpop.f32.mrf.mxu0
      %v2064 = vadd.f32 %v2015, %v2063
      %v2065 = vpop.f32.mrf.mxu0
      %v2066 = vadd.f32 %v2017, %v2065
      %2067 = vmatmul.bf16.gmra.mxu0 %v1687
      %v2068 = vpop.f32.mrf.mxu0
      %v2069 = vadd.f32 %v2020, %v2068
      %v2070 = vpop.f32.mrf.mxu0
      %v2071 = vadd.f32 %v2022, %v2070
      %2072 = vmatmul.bf16.gmra.mxu0 %v1689
      %v2073 = vpop.f32.mrf.mxu0
      %v2074 = vadd.f32 %v2025, %v2073
      %v2075 = vpop.f32.mrf.mxu0
      %v2076 = vadd.f32 %v2027, %v2075
      %2077 = vmatmul.bf16.gmra.mxu0 %v1691
      %v2078 = vpop.f32.mrf.mxu0
      %v2079 = vadd.f32 %v2030, %v2078
      %v2080 = vpop.f32.mrf.mxu0
      %v2081 = vadd.f32 %v2032, %v2080
      %2082 = vmatmul.bf16.gmra.mxu0 %v1693
      %v2083 = vpop.f32.mrf.mxu0
      %v2084 = vadd.f32 %v2035, %v2083
      %v2085 = vpop.f32.mrf.mxu0
      %v2086 = vadd.f32 %v2037, %v2085
      %2087 = vdwg.mxu0
      %v2088 = vmax.f32 %v1951, 0.0
      %v2089 = vmax.f32 %v2049, 0.0
      %v2090 = vmax.f32 %v1953, 0.0
      %v2091 = vmax.f32 %v2051, 0.0
      %v2092 = vmax.f32 %v1956, 0.0
      %v2093 = vmax.f32 %v2054, 0.0
      %v2094 = vmax.f32 %v1958, 0.0
      %v2095 = vmax.f32 %v2056, 0.0
      %v2096 = vmax.f32 %v1961, 0.0
      %v2097 = vmax.f32 %v2059, 0.0
      %v2098 = vmax.f32 %v1963, 0.0
      %v2099 = vmax.f32 %v2061, 0.0
      %v2100 = vmax.f32 %v1966, 0.0
      %v2101 = vmax.f32 %v2064, 0.0
      %v2102 = vmax.f32 %v1968, 0.0
      %v2103 = vmax.f32 %v2066, 0.0
      %v2104 = vmax.f32 %v1971, 0.0
      %v2105 = vmax.f32 %v2069, 0.0
      %v2106 = vmax.f32 %v1973, 0.0
      %v2107 = vmax.f32 %v2071, 0.0
      %v2108 = vmax.f32 %v1976, 0.0
      %v2109 = vmax.f32 %v2074, 0.0
      %v2110 = vmax.f32 %v1978, 0.0
      %v2111 = vmax.f32 %v2076, 0.0
      %v2112 = vmax.f32 %v1981, 0.0
      %v2113 = vmax.f32 %v2079, 0.0
      %v2114 = vmax.f32 %v1983, 0.0
      %v2115 = vmax.f32 %v2081, 0.0
      %v2116 = vmax.f32 %v1986, 0.0
      %v2117 = vmax.f32 %v2084, 0.0
      %v2118 = vmax.f32 %v1988, 0.0
      %v2119 = vmax.f32 %v2086, 0.0
      %v2120 = vpack.c.bf16 %v2090, %v2088
      %v2121 = vpack.c.bf16 %v2091, %v2089
      %v2122 = vpack.c.bf16 %v2094, %v2092
      %v2123 = vpack.c.bf16 %v2095, %v2093
      %v2124 = vpack.c.bf16 %v2098, %v2096
      %v2125 = vpack.c.bf16 %v2099, %v2097
      %v2126 = vpack.c.bf16 %v2102, %v2100
      %v2127 = vpack.c.bf16 %v2103, %v2101
      %v2128 = vpack.c.bf16 %v2106, %v2104
      %v2129 = vpack.c.bf16 %v2107, %v2105
      %v2130 = vpack.c.bf16 %v2110, %v2108
      %v2131 = vpack.c.bf16 %v2111, %v2109
      %v2132 = vpack.c.bf16 %v2114, %v2112
      %v2133 = vpack.c.bf16 %v2115, %v2113
      %v2134 = vpack.c.bf16 %v2118, %v2116
      %v2135 = vpack.c.bf16 %v2119, %v2117
      %v2136 = vld [vmem:[%s10] sm:$0xff]
      %v2137 = vld [vmem:[%s10 + $0x8] sm:$0xff]
      %v2138 = vld [vmem:[%s10 + $0x10] sm:$0xff]
      %v2139 = vld [vmem:[%s10 + $0x18] sm:$0xff]
      %v2140 = vld [vmem:[%s10 + $0x20] sm:$0xff]
      %v2141 = vld [vmem:[%s10 + $0x28] sm:$0xff]
      %v2142 = vld [vmem:[%s10 + $0x30] sm:$0xff]
      %v2143 = vld [vmem:[%s10 + $0x38] sm:$0xff]
      %v2144 = vld [vmem:[%s10 + $0x40] sm:$0xff]
      %v2145 = vld [vmem:[%s10 + $0x48] sm:$0xff]
      %v2146 = vld [vmem:[%s10 + $0x50] sm:$0xff]
      %v2147 = vld [vmem:[%s10 + $0x58] sm:$0xff]
      %v2148 = vld [vmem:[%s10 + $0x60] sm:$0xff]
      %v2149 = vld [vmem:[%s10 + $0x68] sm:$0xff]
      %v2150 = vld [vmem:[%s10 + $0x70] sm:$0xff]
      %v2151 = vld [vmem:[%s10 + $0x78] sm:$0xff]
      %v2152 = vld [vmem:[%s10 + $0x80] sm:$0xff]
      %v2153 = vld [vmem:[%s10 + $0x88] sm:$0xff]
      %v2154 = vld [vmem:[%s10 + $0x90] sm:$0xff]
      %v2155 = vld [vmem:[%s10 + $0x98] sm:$0xff]
      %v2156 = vld [vmem:[%s10 + $0xa0] sm:$0xff]
      %v2157 = vld [vmem:[%s10 + $0xa8] sm:$0xff]
      %v2158 = vld [vmem:[%s10 + $0xb0] sm:$0xff]
      %v2159 = vld [vmem:[%s10 + $0xb8] sm:$0xff]
      %v2160 = vld [vmem:[%s10 + $0xc0] sm:$0xff]
      %v2161 = vld [vmem:[%s10 + $0xc8] sm:$0xff]
      %v2162 = vld [vmem:[%s10 + $0xd0] sm:$0xff]
      %v2163 = vld [vmem:[%s10 + $0xd8] sm:$0xff]
      %v2164 = vld [vmem:[%s10 + $0xe0] sm:$0xff]
      %v2165 = vld [vmem:[%s10 + $0xe8] sm:$0xff]
      %v2166 = vld [vmem:[%s10 + $0xf0] sm:$0xff]
      %v2167 = vld [vmem:[%s10 + $0xf8] sm:$0xff]
      %v2168 = vld [vmem:[%s11] sm:$0x3]
      %v2170 = vperm.slane %v2168, 0
      %v2171 = vperm.slane %v2168, 1
      %v2206 = vunpack.c.l.b16 %v2136
      %v2207 = vunpack.c.h.b16 %v2136
      %v2208 = vunpack.c.l.b16 %v2137
      %v2209 = vunpack.c.h.b16 %v2137
      %v2210 = vunpack.c.l.b16 %v2138
      %v2211 = vunpack.c.h.b16 %v2138
      %v2212 = vunpack.c.l.b16 %v2139
      %v2213 = vunpack.c.h.b16 %v2139
      %v2214 = vunpack.c.l.b16 %v2140
      %v2215 = vunpack.c.h.b16 %v2140
      %v2216 = vunpack.c.l.b16 %v2141
      %v2217 = vunpack.c.h.b16 %v2141
      %v2218 = vunpack.c.l.b16 %v2142
      %v2219 = vunpack.c.h.b16 %v2142
      %v2220 = vunpack.c.l.b16 %v2143
      %v2221 = vunpack.c.h.b16 %v2143
      %v2222 = vunpack.c.l.b16 %v2144
      %v2223 = vunpack.c.h.b16 %v2144
      %v2224 = vunpack.c.l.b16 %v2145
      %v2225 = vunpack.c.h.b16 %v2145
      %v2226 = vunpack.c.l.b16 %v2146
      %v2227 = vunpack.c.h.b16 %v2146
      %v2228 = vunpack.c.l.b16 %v2147
      %v2229 = vunpack.c.h.b16 %v2147
      %v2230 = vunpack.c.l.b16 %v2148
      %v2231 = vunpack.c.h.b16 %v2148
      %v2232 = vunpack.c.l.b16 %v2149
      %v2233 = vunpack.c.h.b16 %v2149
      %v2234 = vunpack.c.l.b16 %v2150
      %v2235 = vunpack.c.h.b16 %v2150
      %v2236 = vunpack.c.l.b16 %v2151
      %v2237 = vunpack.c.h.b16 %v2151
      %v2238 = vunpack.c.l.b16 %v2152
      %v2239 = vunpack.c.h.b16 %v2152
      %v2240 = vunpack.c.l.b16 %v2153
      %v2241 = vunpack.c.h.b16 %v2153
      %v2242 = vunpack.c.l.b16 %v2154
      %v2243 = vunpack.c.h.b16 %v2154
      %v2244 = vunpack.c.l.b16 %v2155
      %v2245 = vunpack.c.h.b16 %v2155
      %v2246 = vunpack.c.l.b16 %v2156
      %v2247 = vunpack.c.h.b16 %v2156
      %v2248 = vunpack.c.l.b16 %v2157
      %v2249 = vunpack.c.h.b16 %v2157
      %v2250 = vunpack.c.l.b16 %v2158
      %v2251 = vunpack.c.h.b16 %v2158
      %v2252 = vunpack.c.l.b16 %v2159
      %v2253 = vunpack.c.h.b16 %v2159
      %v2254 = vunpack.c.l.b16 %v2160
      %v2255 = vunpack.c.h.b16 %v2160
      %v2256 = vunpack.c.l.b16 %v2161
      %v2257 = vunpack.c.h.b16 %v2161
      %v2258 = vunpack.c.l.b16 %v2162
      %v2259 = vunpack.c.h.b16 %v2162
      %v2260 = vunpack.c.l.b16 %v2163
      %v2261 = vunpack.c.h.b16 %v2163
      %v2262 = vunpack.c.l.b16 %v2164
      %v2263 = vunpack.c.h.b16 %v2164
      %v2264 = vunpack.c.l.b16 %v2165
      %v2265 = vunpack.c.h.b16 %v2165
      %v2266 = vunpack.c.l.b16 %v2166
      %v2267 = vunpack.c.h.b16 %v2166
      %v2268 = vunpack.c.l.b16 %v2167
      %v2269 = vunpack.c.h.b16 %v2167
      %v2270 = vpack.c.b16 %v2208, %v2206
      %v2271 = vpack.c.b16 %v2209, %v2207
      %v2272 = vpack.c.b16 %v2212, %v2210
      %v2273 = vpack.c.b16 %v2213, %v2211
      %v2274 = vpack.c.b16 %v2216, %v2214
      %v2275 = vpack.c.b16 %v2217, %v2215
      %v2276 = vpack.c.b16 %v2220, %v2218
      %v2277 = vpack.c.b16 %v2221, %v2219
      %v2278 = vpack.c.b16 %v2224, %v2222
      %v2279 = vpack.c.b16 %v2225, %v2223
      %v2280 = vpack.c.b16 %v2228, %v2226
      %v2281 = vpack.c.b16 %v2229, %v2227
      %v2282 = vpack.c.b16 %v2232, %v2230
      %v2283 = vpack.c.b16 %v2233, %v2231
      %v2284 = vpack.c.b16 %v2236, %v2234
      %v2285 = vpack.c.b16 %v2237, %v2235
      %v2286 = vpack.c.b16 %v2240, %v2238
      %v2287 = vpack.c.b16 %v2241, %v2239
      %v2288 = vpack.c.b16 %v2244, %v2242
      %v2289 = vpack.c.b16 %v2245, %v2243
      %v2290 = vpack.c.b16 %v2248, %v2246
      %v2291 = vpack.c.b16 %v2249, %v2247
      %v2292 = vpack.c.b16 %v2252, %v2250
      %v2293 = vpack.c.b16 %v2253, %v2251
      %v2294 = vpack.c.b16 %v2256, %v2254
      %v2295 = vpack.c.b16 %v2257, %v2255
      %v2296 = vpack.c.b16 %v2260, %v2258
      %v2297 = vpack.c.b16 %v2261, %v2259
      %v2298 = vpack.c.b16 %v2264, %v2262
      %v2299 = vpack.c.b16 %v2265, %v2263
      %v2300 = vpack.c.b16 %v2268, %v2266
      %v2301 = vpack.c.b16 %v2269, %v2267
      %2334 = vmatpush.bf16.msra.mxu0 %v2284
      %2335 = vmatpush.bf16.msra.mxu0 %v2282
      %2336 = vmatpush.bf16.msra.mxu0 %v2280
      %2337 = vmatpush.bf16.msra.mxu0 %v2278
      %2338 = vmatpush.bf16.msra.mxu0 %v2276
      %2339 = vmatpush.bf16.msra.mxu0 %v2274
      %2340 = vmatpush.bf16.msra.mxu0 %v2272
      %2341 = vmatpush.bf16.msra.mxu0 %v2270
      %2342 = vmatmul.bf16.gmra.mxu0 %v2120
      %v2343 = vpop.f32.mrf.mxu0
      %v2344 = vadd.f32 %v2170, %v2343
      %v2345 = vpop.f32.mrf.mxu0
      %v2346 = vadd.f32 %v2170, %v2345
      %2347 = vmatmul.bf16.gmra.mxu0 %v2122
      %v2348 = vpop.f32.mrf.mxu0
      %v2349 = vadd.f32 %v2170, %v2348
      %v2350 = vpop.f32.mrf.mxu0
      %v2351 = vadd.f32 %v2170, %v2350
      %2352 = vmatmul.bf16.gmra.mxu0 %v2124
      %v2353 = vpop.f32.mrf.mxu0
      %v2354 = vadd.f32 %v2170, %v2353
      %v2355 = vpop.f32.mrf.mxu0
      %v2356 = vadd.f32 %v2170, %v2355
      %2357 = vmatmul.bf16.gmra.mxu0 %v2126
      %v2358 = vpop.f32.mrf.mxu0
      %v2359 = vadd.f32 %v2170, %v2358
      %v2360 = vpop.f32.mrf.mxu0
      %v2361 = vadd.f32 %v2170, %v2360
      %2362 = vmatmul.bf16.gmra.mxu0 %v2128
      %v2363 = vpop.f32.mrf.mxu0
      %v2364 = vadd.f32 %v2170, %v2363
      %v2365 = vpop.f32.mrf.mxu0
      %v2366 = vadd.f32 %v2170, %v2365
      %2367 = vmatmul.bf16.gmra.mxu0 %v2130
      %v2368 = vpop.f32.mrf.mxu0
      %v2369 = vadd.f32 %v2170, %v2368
      %v2370 = vpop.f32.mrf.mxu0
      %v2371 = vadd.f32 %v2170, %v2370
      %2372 = vmatmul.bf16.gmra.mxu0 %v2132
      %v2373 = vpop.f32.mrf.mxu0
      %v2374 = vadd.f32 %v2170, %v2373
      %v2375 = vpop.f32.mrf.mxu0
      %v2376 = vadd.f32 %v2170, %v2375
      %2377 = vmatmul.bf16.gmra.mxu0 %v2134
      %v2378 = vpop.f32.mrf.mxu0
      %v2379 = vadd.f32 %v2170, %v2378
      %v2380 = vpop.f32.mrf.mxu0
      %v2381 = vadd.f32 %v2170, %v2380
      %2382 = vdwg.mxu0
      %2383 = vmatpush.bf16.msra.mxu0 %v2300
      %2384 = vmatpush.bf16.msra.mxu0 %v2298
      %2385 = vmatpush.bf16.msra.mxu0 %v2296
      %2386 = vmatpush.bf16.msra.mxu0 %v2294
      %2387 = vmatpush.bf16.msra.mxu0 %v2292
      %2388 = vmatpush.bf16.msra.mxu0 %v2290
      %2389 = vmatpush.bf16.msra.mxu0 %v2288
      %2390 = vmatpush.bf16.msra.mxu0 %v2286
      %2391 = vmatmul.bf16.gmra.mxu0 %v2121
      %v2392 = vpop.f32.mrf.mxu0
      %v2393 = vadd.f32 %v2344, %v2392
      %v2394 = vpop.f32.mrf.mxu0
      %v2395 = vadd.f32 %v2346, %v2394
      %2396 = vmatmul.bf16.gmra.mxu0 %v2123
      %v2397 = vpop.f32.mrf.mxu0
      %v2398 = vadd.f32 %v2349, %v2397
      %v2399 = vpop.f32.mrf.mxu0
      %v2400 = vadd.f32 %v2351, %v2399
      %2401 = vmatmul.bf16.gmra.mxu0 %v2125
      %v2402 = vpop.f32.mrf.mxu0
      %v2403 = vadd.f32 %v2354, %v2402
      %v2404 = vpop.f32.mrf.mxu0
      %v2405 = vadd.f32 %v2356, %v2404
      %2406 = vmatmul.bf16.gmra.mxu0 %v2127
      %v2407 = vpop.f32.mrf.mxu0
      %v2408 = vadd.f32 %v2359, %v2407
      %v2409 = vpop.f32.mrf.mxu0
      %v2410 = vadd.f32 %v2361, %v2409
      %2411 = vmatmul.bf16.gmra.mxu0 %v2129
      %v2412 = vpop.f32.mrf.mxu0
      %v2413 = vadd.f32 %v2364, %v2412
      %v2414 = vpop.f32.mrf.mxu0
      %v2415 = vadd.f32 %v2366, %v2414
      %2416 = vmatmul.bf16.gmra.mxu0 %v2131
      %v2417 = vpop.f32.mrf.mxu0
      %v2418 = vadd.f32 %v2369, %v2417
      %v2419 = vpop.f32.mrf.mxu0
      %v2420 = vadd.f32 %v2371, %v2419
      %2421 = vmatmul.bf16.gmra.mxu0 %v2133
      %v2422 = vpop.f32.mrf.mxu0
      %v2423 = vadd.f32 %v2374, %v2422
      %v2424 = vpop.f32.mrf.mxu0
      %v2425 = vadd.f32 %v2376, %v2424
      %2426 = vmatmul.bf16.gmra.mxu0 %v2135
      %v2427 = vpop.f32.mrf.mxu0
      %v2428 = vadd.f32 %v2379, %v2427
      %v2429 = vpop.f32.mrf.mxu0
      %v2430 = vadd.f32 %v2381, %v2429
      %2431 = vdwg.mxu0
      %2432 = vmatpush.bf16.msra.mxu0 %v2285
      %2433 = vmatpush.bf16.msra.mxu0 %v2283
      %2434 = vmatpush.bf16.msra.mxu0 %v2281
      %2435 = vmatpush.bf16.msra.mxu0 %v2279
      %2436 = vmatpush.bf16.msra.mxu0 %v2277
      %2437 = vmatpush.bf16.msra.mxu0 %v2275
      %2438 = vmatpush.bf16.msra.mxu0 %v2273
      %2439 = vmatpush.bf16.msra.mxu0 %v2271
      %2440 = vmatmul.bf16.gmra.mxu0 %v2120
      %v2441 = vpop.f32.mrf.mxu0
      %v2442 = vadd.f32 %v2171, %v2441
      %v2443 = vpop.f32.mrf.mxu0
      %v2444 = vadd.f32 %v2171, %v2443
      %2445 = vmatmul.bf16.gmra.mxu0 %v2122
      %v2446 = vpop.f32.mrf.mxu0
      %v2447 = vadd.f32 %v2171, %v2446
      %v2448 = vpop.f32.mrf.mxu0
      %v2449 = vadd.f32 %v2171, %v2448
      %2450 = vmatmul.bf16.gmra.mxu0 %v2124
      %v2451 = vpop.f32.mrf.mxu0
      %v2452 = vadd.f32 %v2171, %v2451
      %v2453 = vpop.f32.mrf.mxu0
      %v2454 = vadd.f32 %v2171, %v2453
      %2455 = vmatmul.bf16.gmra.mxu0 %v2126
      %v2456 = vpop.f32.mrf.mxu0
      %v2457 = vadd.f32 %v2171, %v2456
      %v2458 = vpop.f32.mrf.mxu0
      %v2459 = vadd.f32 %v2171, %v2458
      %2460 = vmatmul.bf16.gmra.mxu0 %v2128
      %v2461 = vpop.f32.mrf.mxu0
      %v2462 = vadd.f32 %v2171, %v2461
      %v2463 = vpop.f32.mrf.mxu0
      %v2464 = vadd.f32 %v2171, %v2463
      %2465 = vmatmul.bf16.gmra.mxu0 %v2130
      %v2466 = vpop.f32.mrf.mxu0
      %v2467 = vadd.f32 %v2171, %v2466
      %v2468 = vpop.f32.mrf.mxu0
      %v2469 = vadd.f32 %v2171, %v2468
      %2470 = vmatmul.bf16.gmra.mxu0 %v2132
      %v2471 = vpop.f32.mrf.mxu0
      %v2472 = vadd.f32 %v2171, %v2471
      %v2473 = vpop.f32.mrf.mxu0
      %v2474 = vadd.f32 %v2171, %v2473
      %2475 = vmatmul.bf16.gmra.mxu0 %v2134
      %v2476 = vpop.f32.mrf.mxu0
      %v2477 = vadd.f32 %v2171, %v2476
      %v2478 = vpop.f32.mrf.mxu0
      %v2479 = vadd.f32 %v2171, %v2478
      %2480 = vdwg.mxu0
      %2481 = vmatpush.bf16.msra.mxu0 %v2301
      %2482 = vmatpush.bf16.msra.mxu0 %v2299
      %2483 = vmatpush.bf16.msra.mxu0 %v2297
      %2484 = vmatpush.bf16.msra.mxu0 %v2295
      %2485 = vmatpush.bf16.msra.mxu0 %v2293
      %2486 = vmatpush.bf16.msra.mxu0 %v2291
      %2487 = vmatpush.bf16.msra.mxu0 %v2289
      %2488 = vmatpush.bf16.msra.mxu0 %v2287
      %2489 = vmatmul.bf16.gmra.mxu0 %v2121
      %v2490 = vpop.f32.mrf.mxu0
      %v2491 = vadd.f32 %v2442, %v2490
      %v2492 = vpop.f32.mrf.mxu0
      %v2493 = vadd.f32 %v2444, %v2492
      %2494 = vmatmul.bf16.gmra.mxu0 %v2123
      %v2495 = vpop.f32.mrf.mxu0
      %v2496 = vadd.f32 %v2447, %v2495
      %v2497 = vpop.f32.mrf.mxu0
      %v2498 = vadd.f32 %v2449, %v2497
      %2499 = vmatmul.bf16.gmra.mxu0 %v2125
      %v2500 = vpop.f32.mrf.mxu0
      %v2501 = vadd.f32 %v2452, %v2500
      %v2502 = vpop.f32.mrf.mxu0
      %v2503 = vadd.f32 %v2454, %v2502
      %2504 = vmatmul.bf16.gmra.mxu0 %v2127
      %v2505 = vpop.f32.mrf.mxu0
      %v2506 = vadd.f32 %v2457, %v2505
      %v2507 = vpop.f32.mrf.mxu0
      %v2508 = vadd.f32 %v2459, %v2507
      %2509 = vmatmul.bf16.gmra.mxu0 %v2129
      %v2510 = vpop.f32.mrf.mxu0
      %v2511 = vadd.f32 %v2462, %v2510
      %v2512 = vpop.f32.mrf.mxu0
      %v2513 = vadd.f32 %v2464, %v2512
      %2514 = vmatmul.bf16.gmra.mxu0 %v2131
      %v2515 = vpop.f32.mrf.mxu0
      %v2516 = vadd.f32 %v2467, %v2515
      %v2517 = vpop.f32.mrf.mxu0
      %v2518 = vadd.f32 %v2469, %v2517
      %2519 = vmatmul.bf16.gmra.mxu0 %v2133
      %v2520 = vpop.f32.mrf.mxu0
      %v2521 = vadd.f32 %v2472, %v2520
      %v2522 = vpop.f32.mrf.mxu0
      %v2523 = vadd.f32 %v2474, %v2522
      %2524 = vmatmul.bf16.gmra.mxu0 %v2135
      %v2525 = vpop.f32.mrf.mxu0
      %v2526 = vadd.f32 %v2477, %v2525
      %v2527 = vpop.f32.mrf.mxu0
      %v2528 = vadd.f32 %v2479, %v2527
      %2529 = vdwg.mxu0
      %v2530 = vmax.f32 %v2393, 0.0
      %v2531 = vmax.f32 %v2491, 0.0
      %v2532 = vmax.f32 %v2395, 0.0
      %v2533 = vmax.f32 %v2493, 0.0
      %v2534 = vmax.f32 %v2398, 0.0
      %v2535 = vmax.f32 %v2496, 0.0
      %v2536 = vmax.f32 %v2400, 0.0
      %v2537 = vmax.f32 %v2498, 0.0
      %v2538 = vmax.f32 %v2403, 0.0
      %v2539 = vmax.f32 %v2501, 0.0
      %v2540 = vmax.f32 %v2405, 0.0
      %v2541 = vmax.f32 %v2503, 0.0
      %v2542 = vmax.f32 %v2408, 0.0
      %v2543 = vmax.f32 %v2506, 0.0
      %v2544 = vmax.f32 %v2410, 0.0
      %v2545 = vmax.f32 %v2508, 0.0
      %v2546 = vmax.f32 %v2413, 0.0
      %v2547 = vmax.f32 %v2511, 0.0
      %v2548 = vmax.f32 %v2415, 0.0
      %v2549 = vmax.f32 %v2513, 0.0
      %v2550 = vmax.f32 %v2418, 0.0
      %v2551 = vmax.f32 %v2516, 0.0
      %v2552 = vmax.f32 %v2420, 0.0
      %v2553 = vmax.f32 %v2518, 0.0
      %v2554 = vmax.f32 %v2423, 0.0
      %v2555 = vmax.f32 %v2521, 0.0
      %v2556 = vmax.f32 %v2425, 0.0
      %v2557 = vmax.f32 %v2523, 0.0
      %v2558 = vmax.f32 %v2428, 0.0
      %v2559 = vmax.f32 %v2526, 0.0
      %v2560 = vmax.f32 %v2430, 0.0
      %v2561 = vmax.f32 %v2528, 0.0
      %v2562 = vpack.c.bf16 %v2532, %v2530
      %v2563 = vpack.c.bf16 %v2533, %v2531
      %v2564 = vpack.c.bf16 %v2536, %v2534
      %v2565 = vpack.c.bf16 %v2537, %v2535
      %v2566 = vpack.c.bf16 %v2540, %v2538
      %v2567 = vpack.c.bf16 %v2541, %v2539
      %v2568 = vpack.c.bf16 %v2544, %v2542
      %v2569 = vpack.c.bf16 %v2545, %v2543
      %v2570 = vpack.c.bf16 %v2548, %v2546
      %v2571 = vpack.c.bf16 %v2549, %v2547
      %v2572 = vpack.c.bf16 %v2552, %v2550
      %v2573 = vpack.c.bf16 %v2553, %v2551
      %v2574 = vpack.c.bf16 %v2556, %v2554
      %v2575 = vpack.c.bf16 %v2557, %v2555
      %v2576 = vpack.c.bf16 %v2560, %v2558
      %v2577 = vpack.c.bf16 %v2561, %v2559
      %v2578 = vld [vmem:[%s12] sm:$0xf]
      %v2579 = vld [vmem:[%s12 + $0x4] sm:$0xf]
      %v2580 = vld [vmem:[%s12 + $0x8] sm:$0xf]
      %v2581 = vld [vmem:[%s12 + $0xc] sm:$0xf]
      %v2582 = vld [vmem:[%s12 + $0x10] sm:$0xf]
      %v2583 = vld [vmem:[%s12 + $0x14] sm:$0xf]
      %v2584 = vld [vmem:[%s12 + $0x18] sm:$0xf]
      %v2585 = vld [vmem:[%s12 + $0x1c] sm:$0xf]
      %v2586 = vld [vmem:[%s12 + $0x20] sm:$0xf]
      %v2587 = vld [vmem:[%s12 + $0x24] sm:$0xf]
      %v2588 = vld [vmem:[%s12 + $0x28] sm:$0xf]
      %v2589 = vld [vmem:[%s12 + $0x2c] sm:$0xf]
      %v2590 = vld [vmem:[%s12 + $0x30] sm:$0xf]
      %v2591 = vld [vmem:[%s12 + $0x34] sm:$0xf]
      %v2592 = vld [vmem:[%s12 + $0x38] sm:$0xf]
      %v2593 = vld [vmem:[%s12 + $0x3c] sm:$0xf]
      %v2594 = vld [vmem:[%s12 + $0x40] sm:$0xf]
      %v2595 = vld [vmem:[%s12 + $0x44] sm:$0xf]
      %v2596 = vld [vmem:[%s12 + $0x48] sm:$0xf]
      %v2597 = vld [vmem:[%s12 + $0x4c] sm:$0xf]
      %v2598 = vld [vmem:[%s12 + $0x50] sm:$0xf]
      %v2599 = vld [vmem:[%s12 + $0x54] sm:$0xf]
      %v2600 = vld [vmem:[%s12 + $0x58] sm:$0xf]
      %v2601 = vld [vmem:[%s12 + $0x5c] sm:$0xf]
      %v2602 = vld [vmem:[%s12 + $0x60] sm:$0xf]
      %v2603 = vld [vmem:[%s12 + $0x64] sm:$0xf]
      %v2604 = vld [vmem:[%s12 + $0x68] sm:$0xf]
      %v2605 = vld [vmem:[%s12 + $0x6c] sm:$0xf]
      %v2606 = vld [vmem:[%s12 + $0x70] sm:$0xf]
      %v2607 = vld [vmem:[%s12 + $0x74] sm:$0xf]
      %v2608 = vld [vmem:[%s12 + $0x78] sm:$0xf]
      %v2609 = vld [vmem:[%s12 + $0x7c] sm:$0xf]
      %v2610 = vld [vmem:[%s13] sm:$0x1]
      %v2612 = vperm.slane %v2610, 0
      %v2646 = vunpack.c.l.b16 %v2578
      %v2647 = vunpack.c.l.b16 %v2579
      %v2648 = vunpack.c.l.b16 %v2580
      %v2649 = vunpack.c.l.b16 %v2581
      %v2650 = vunpack.c.l.b16 %v2582
      %v2651 = vunpack.c.l.b16 %v2583
      %v2652 = vunpack.c.l.b16 %v2584
      %v2653 = vunpack.c.l.b16 %v2585
      %v2654 = vunpack.c.l.b16 %v2586
      %v2655 = vunpack.c.l.b16 %v2587
      %v2656 = vunpack.c.l.b16 %v2588
      %v2657 = vunpack.c.l.b16 %v2589
      %v2658 = vunpack.c.l.b16 %v2590
      %v2659 = vunpack.c.l.b16 %v2591
      %v2660 = vunpack.c.l.b16 %v2592
      %v2661 = vunpack.c.l.b16 %v2593
      %v2662 = vunpack.c.l.b16 %v2594
      %v2663 = vunpack.c.l.b16 %v2595
      %v2664 = vunpack.c.l.b16 %v2596
      %v2665 = vunpack.c.l.b16 %v2597
      %v2666 = vunpack.c.l.b16 %v2598
      %v2667 = vunpack.c.l.b16 %v2599
      %v2668 = vunpack.c.l.b16 %v2600
      %v2669 = vunpack.c.l.b16 %v2601
      %v2670 = vunpack.c.l.b16 %v2602
      %v2671 = vunpack.c.l.b16 %v2603
      %v2672 = vunpack.c.l.b16 %v2604
      %v2673 = vunpack.c.l.b16 %v2605
      %v2674 = vunpack.c.l.b16 %v2606
      %v2675 = vunpack.c.l.b16 %v2607
      %v2676 = vunpack.c.l.b16 %v2608
      %v2677 = vunpack.c.l.b16 %v2609
      %v2678 = vpack.c.b16 %v2647, %v2646
      %v2679 = vpack.c.b16 %v2649, %v2648
      %v2680 = vpack.c.b16 %v2651, %v2650
      %v2681 = vpack.c.b16 %v2653, %v2652
      %v2682 = vpack.c.b16 %v2655, %v2654
      %v2683 = vpack.c.b16 %v2657, %v2656
      %v2684 = vpack.c.b16 %v2659, %v2658
      %v2685 = vpack.c.b16 %v2661, %v2660
      %v2686 = vpack.c.b16 %v2663, %v2662
      %v2687 = vpack.c.b16 %v2665, %v2664
      %v2688 = vpack.c.b16 %v2667, %v2666
      %v2689 = vpack.c.b16 %v2669, %v2668
      %v2690 = vpack.c.b16 %v2671, %v2670
      %v2691 = vpack.c.b16 %v2673, %v2672
      %v2692 = vpack.c.b16 %v2675, %v2674
      %v2693 = vpack.c.b16 %v2677, %v2676
      %2710 = vmatpush.bf16.msra.mxu0 %v2685
      %2711 = vmatpush.bf16.msra.mxu0 %v2684
      %2712 = vmatpush.bf16.msra.mxu0 %v2683
      %2713 = vmatpush.bf16.msra.mxu0 %v2682
      %2714 = vmatpush.bf16.msra.mxu0 %v2681
      %2715 = vmatpush.bf16.msra.mxu0 %v2680
      %2716 = vmatpush.bf16.msra.mxu0 %v2679
      %2717 = vmatpush.bf16.msra.mxu0 %v2678
      %2718 = vmatmul.bf16.gmra.mxu0 %v2562
      %v2719 = vpop.f32.mrf.mxu0
      %v2720 = vadd.f32 %v2612, %v2719
      %v2721 = vpop.f32.mrf.mxu0
      %v2722 = vadd.f32 %v2612, %v2721
      %2723 = vmatmul.bf16.gmra.mxu0 %v2564
      %v2724 = vpop.f32.mrf.mxu0
      %v2725 = vadd.f32 %v2612, %v2724
      %v2726 = vpop.f32.mrf.mxu0
      %v2727 = vadd.f32 %v2612, %v2726
      %2728 = vmatmul.bf16.gmra.mxu0 %v2566
      %v2729 = vpop.f32.mrf.mxu0
      %v2730 = vadd.f32 %v2612, %v2729
      %v2731 = vpop.f32.mrf.mxu0
      %v2732 = vadd.f32 %v2612, %v2731
      %2733 = vmatmul.bf16.gmra.mxu0 %v2568
      %v2734 = vpop.f32.mrf.mxu0
      %v2735 = vadd.f32 %v2612, %v2734
      %v2736 = vpop.f32.mrf.mxu0
      %v2737 = vadd.f32 %v2612, %v2736
      %2738 = vmatmul.bf16.gmra.mxu0 %v2570
      %v2739 = vpop.f32.mrf.mxu0
      %v2740 = vadd.f32 %v2612, %v2739
      %v2741 = vpop.f32.mrf.mxu0
      %v2742 = vadd.f32 %v2612, %v2741
      %2743 = vmatmul.bf16.gmra.mxu0 %v2572
      %v2744 = vpop.f32.mrf.mxu0
      %v2745 = vadd.f32 %v2612, %v2744
      %v2746 = vpop.f32.mrf.mxu0
      %v2747 = vadd.f32 %v2612, %v2746
      %2748 = vmatmul.bf16.gmra.mxu0 %v2574
      %v2749 = vpop.f32.mrf.mxu0
      %v2750 = vadd.f32 %v2612, %v2749
      %v2751 = vpop.f32.mrf.mxu0
      %v2752 = vadd.f32 %v2612, %v2751
      %2753 = vmatmul.bf16.gmra.mxu0 %v2576
      %v2754 = vpop.f32.mrf.mxu0
      %v2755 = vadd.f32 %v2612, %v2754
      %v2756 = vpop.f32.mrf.mxu0
      %v2757 = vadd.f32 %v2612, %v2756
      %2758 = vdwg.mxu0
      %2759 = vmatpush.bf16.msra.mxu0 %v2693
      %2760 = vmatpush.bf16.msra.mxu0 %v2692
      %2761 = vmatpush.bf16.msra.mxu0 %v2691
      %2762 = vmatpush.bf16.msra.mxu0 %v2690
      %2763 = vmatpush.bf16.msra.mxu0 %v2689
      %2764 = vmatpush.bf16.msra.mxu0 %v2688
      %2765 = vmatpush.bf16.msra.mxu0 %v2687
      %2766 = vmatpush.bf16.msra.mxu0 %v2686
      %2767 = vmatmul.bf16.gmra.mxu0 %v2563
      %v2768 = vpop.f32.mrf.mxu0
      %v2769 = vadd.f32 %v2720, %v2768
      %v2770 = vpop.f32.mrf.mxu0
      %v2771 = vadd.f32 %v2722, %v2770
      %2772 = vmatmul.bf16.gmra.mxu0 %v2565
      %v2773 = vpop.f32.mrf.mxu0
      %v2774 = vadd.f32 %v2725, %v2773
      %v2775 = vpop.f32.mrf.mxu0
      %v2776 = vadd.f32 %v2727, %v2775
      %2777 = vmatmul.bf16.gmra.mxu0 %v2567
      %v2778 = vpop.f32.mrf.mxu0
      %v2779 = vadd.f32 %v2730, %v2778
      %v2780 = vpop.f32.mrf.mxu0
      %v2781 = vadd.f32 %v2732, %v2780
      %2782 = vmatmul.bf16.gmra.mxu0 %v2569
      %v2783 = vpop.f32.mrf.mxu0
      %v2784 = vadd.f32 %v2735, %v2783
      %v2785 = vpop.f32.mrf.mxu0
      %v2786 = vadd.f32 %v2737, %v2785
      %2787 = vmatmul.bf16.gmra.mxu0 %v2571
      %v2788 = vpop.f32.mrf.mxu0
      %v2789 = vadd.f32 %v2740, %v2788
      %v2790 = vpop.f32.mrf.mxu0
      %v2791 = vadd.f32 %v2742, %v2790
      %2792 = vmatmul.bf16.gmra.mxu0 %v2573
      %v2793 = vpop.f32.mrf.mxu0
      %v2794 = vadd.f32 %v2745, %v2793
      %v2795 = vpop.f32.mrf.mxu0
      %v2796 = vadd.f32 %v2747, %v2795
      %2797 = vmatmul.bf16.gmra.mxu0 %v2575
      %v2798 = vpop.f32.mrf.mxu0
      %v2799 = vadd.f32 %v2750, %v2798
      %v2800 = vpop.f32.mrf.mxu0
      %v2801 = vadd.f32 %v2752, %v2800
      %2802 = vmatmul.bf16.gmra.mxu0 %v2577
      %v2803 = vpop.f32.mrf.mxu0
      %v2804 = vadd.f32 %v2755, %v2803
      %v2805 = vpop.f32.mrf.mxu0
      %v2806 = vadd.f32 %v2757, %v2805
      %2807 = vdwg.mxu0
      %v2808 = vld [vmem:[#allocation2] sm:$0xff]
      %v2809 = vld [vmem:[#allocation2 + $0x8] sm:$0xff]
      %v2810 = vld [vmem:[#allocation2 + $0x10] sm:$0xff]
      %v2811 = vld [vmem:[#allocation2 + $0x18] sm:$0xff]
      %v2812 = vld [vmem:[#allocation2 + $0x20] sm:$0xff]
      %v2813 = vld [vmem:[#allocation2 + $0x28] sm:$0xff]
      %v2814 = vld [vmem:[#allocation2 + $0x30] sm:$0xff]
      %v2815 = vld [vmem:[#allocation2 + $0x38] sm:$0xff]
      %v2816 = vld [vmem:[#allocation2 + $0x40] sm:$0xff]
      %v2817 = vld [vmem:[#allocation2 + $0x48] sm:$0xff]
      %v2818 = vld [vmem:[#allocation2 + $0x50] sm:$0xff]
      %v2819 = vld [vmem:[#allocation2 + $0x58] sm:$0xff]
      %v2820 = vld [vmem:[#allocation2 + $0x60] sm:$0xff]
      %v2821 = vld [vmem:[#allocation2 + $0x68] sm:$0xff]
      %v2822 = vld [vmem:[#allocation2 + $0x70] sm:$0xff]
      %v2823 = vld [vmem:[#allocation2 + $0x78] sm:$0xff]
      %v2824 = vld [vmem:[%s510] sm:$0xff]
      %v2825 = vld [vmem:[%s510 + $0x8] sm:$0xff]
      %v2826 = vld [vmem:[%s510 + $0x10] sm:$0xff]
      %v2827 = vld [vmem:[%s510 + $0x18] sm:$0xff]
      %v2828 = vld [vmem:[%s510 + $0x20] sm:$0xff]
      %v2829 = vld [vmem:[%s510 + $0x28] sm:$0xff]
      %v2830 = vld [vmem:[%s510 + $0x30] sm:$0xff]
      %v2831 = vld [vmem:[%s510 + $0x38] sm:$0xff]
      %v2832 = vld [vmem:[%s510 + $0x40] sm:$0xff]
      %v2833 = vld [vmem:[%s510 + $0x48] sm:$0xff]
      %v2834 = vld [vmem:[%s510 + $0x50] sm:$0xff]
      %v2835 = vld [vmem:[%s510 + $0x58] sm:$0xff]
      %v2836 = vld [vmem:[%s510 + $0x60] sm:$0xff]
      %v2837 = vld [vmem:[%s510 + $0x68] sm:$0xff]
      %v2838 = vld [vmem:[%s510 + $0x70] sm:$0xff]
      %v2839 = vld [vmem:[%s510 + $0x78] sm:$0xff]
      %2841 = vset.pattern.permute.xlu0 0
      %2842 = vperm.xlu0 %2841, %v2824
      %v2843 = vpop.permute.xlu0 %2842
      %2846 = vset.pattern.permute.xlu0 0
      %2847 = vperm.xlu0 %2846, %v2825
      %v2848 = vpop.permute.xlu0 %2847
      %2851 = vset.pattern.permute.xlu0 0
      %2852 = vperm.xlu0 %2851, %v2826
      %v2853 = vpop.permute.xlu0 %2852
      %2856 = vset.pattern.permute.xlu0 0
      %2857 = vperm.xlu0 %2856, %v2827
      %v2858 = vpop.permute.xlu0 %2857
      %2861 = vset.pattern.permute.xlu0 0
      %2862 = vperm.xlu0 %2861, %v2828
      %v2863 = vpop.permute.xlu0 %2862
      %2866 = vset.pattern.permute.xlu0 0
      %2867 = vperm.xlu0 %2866, %v2829
      %v2868 = vpop.permute.xlu0 %2867
      %2871 = vset.pattern.permute.xlu0 0
      %2872 = vperm.xlu0 %2871, %v2830
      %v2873 = vpop.permute.xlu0 %2872
      %2876 = vset.pattern.permute.xlu0 0
      %2877 = vperm.xlu0 %2876, %v2831
      %v2878 = vpop.permute.xlu0 %2877
      %2881 = vset.pattern.permute.xlu0 0
      %2882 = vperm.xlu0 %2881, %v2832
      %v2883 = vpop.permute.xlu0 %2882
      %2886 = vset.pattern.permute.xlu0 0
      %2887 = vperm.xlu0 %2886, %v2833
      %v2888 = vpop.permute.xlu0 %2887
      %2891 = vset.pattern.permute.xlu0 0
      %2892 = vperm.xlu0 %2891, %v2834
      %v2893 = vpop.permute.xlu0 %2892
      %2896 = vset.pattern.permute.xlu0 0
      %2897 = vperm.xlu0 %2896, %v2835
      %v2898 = vpop.permute.xlu0 %2897
      %2901 = vset.pattern.permute.xlu0 0
      %2902 = vperm.xlu0 %2901, %v2836
      %v2903 = vpop.permute.xlu0 %2902
      %2906 = vset.pattern.permute.xlu0 0
      %2907 = vperm.xlu0 %2906, %v2837
      %v2908 = vpop.permute.xlu0 %2907
      %2911 = vset.pattern.permute.xlu0 0
      %2912 = vperm.xlu0 %2911, %v2838
      %v2913 = vpop.permute.xlu0 %2912
      %2916 = vset.pattern.permute.xlu0 0
      %2917 = vperm.xlu0 %2916, %v2839
      %v2918 = vpop.permute.xlu0 %2917
      %v2920 = vmul.f32 %v2769, %v2843
      %v2921 = vmul.f32 %v2771, %v2848
      %v2922 = vmul.f32 %v2774, %v2853
      %v2923 = vmul.f32 %v2776, %v2858
      %v2924 = vmul.f32 %v2779, %v2863
      %v2925 = vmul.f32 %v2781, %v2868
      %v2926 = vmul.f32 %v2784, %v2873
      %v2927 = vmul.f32 %v2786, %v2878
      %v2928 = vmul.f32 %v2789, %v2883
      %v2929 = vmul.f32 %v2791, %v2888
      %v2930 = vmul.f32 %v2794, %v2893
      %v2931 = vmul.f32 %v2796, %v2898
      %v2932 = vmul.f32 %v2799, %v2903
      %v2933 = vmul.f32 %v2801, %v2908
      %v2934 = vmul.f32 %v2804, %v2913
      %v2935 = vmul.f32 %v2806, %v2918
      %v2936 = vadd.f32 %v2808, %v2920
      %v2937 = vadd.f32 %v2809, %v2921
      %v2938 = vadd.f32 %v2810, %v2922
      %v2939 = vadd.f32 %v2811, %v2923
      %v2940 = vadd.f32 %v2812, %v2924
      %v2941 = vadd.f32 %v2813, %v2925
      %v2942 = vadd.f32 %v2814, %v2926
      %v2943 = vadd.f32 %v2815, %v2927
      %v2944 = vadd.f32 %v2816, %v2928
      %v2945 = vadd.f32 %v2817, %v2929
      %v2946 = vadd.f32 %v2818, %v2930
      %v2947 = vadd.f32 %v2819, %v2931
      %v2948 = vadd.f32 %v2820, %v2932
      %v2949 = vadd.f32 %v2821, %v2933
      %v2950 = vadd.f32 %v2822, %v2934
      %v2951 = vadd.f32 %v2823, %v2935
      %2952 = vst [vmem:[#allocation2] sm:$0xff] %v2936
      %2953 = vst [vmem:[#allocation2 + $0x8] sm:$0xff] %v2937
      %2954 = vst [vmem:[#allocation2 + $0x10] sm:$0xff] %v2938
      %2955 = vst [vmem:[#allocation2 + $0x18] sm:$0xff] %v2939
      %2956 = vst [vmem:[#allocation2 + $0x20] sm:$0xff] %v2940
      %2957 = vst [vmem:[#allocation2 + $0x28] sm:$0xff] %v2941
      %2958 = vst [vmem:[#allocation2 + $0x30] sm:$0xff] %v2942
      %2959 = vst [vmem:[#allocation2 + $0x38] sm:$0xff] %v2943
      %2960 = vst [vmem:[#allocation2 + $0x40] sm:$0xff] %v2944
      %2961 = vst [vmem:[#allocation2 + $0x48] sm:$0xff] %v2945
      %2962 = vst [vmem:[#allocation2 + $0x50] sm:$0xff] %v2946
      %2963 = vst [vmem:[#allocation2 + $0x58] sm:$0xff] %v2947
      %2964 = vst [vmem:[#allocation2 + $0x60] sm:$0xff] %v2948
      %2965 = vst [vmem:[#allocation2 + $0x68] sm:$0xff] %v2949
      %2966 = vst [vmem:[#allocation2 + $0x70] sm:$0xff] %v2950
      %2967 = vst [vmem:[#allocation2 + $0x78] sm:$0xff] %v2951
      %p2968 = scmp.eq.s32.totalorder %s30, 3
      // Predicated region
      $region81: #{liif_forward.1} parent=75 // pred_check
        %p2969 = pneg %p2968
      $region82: #{liif_forward.1} parent=75 // pred_check_branch
        %2971 = sbr.rel (%p2969) target = $region84
      $region83: #{liif_forward.1} parent=75 // pred_region
        %v2972 = vld [vmem:[#allocation2] sm:$0xff]
        %v2973 = vld [vmem:[#allocation2 + $0x8] sm:$0xff]
        %v2974 = vld [vmem:[#allocation2 + $0x10] sm:$0xff]
        %v2975 = vld [vmem:[#allocation2 + $0x18] sm:$0xff]
        %v2976 = vld [vmem:[#allocation2 + $0x20] sm:$0xff]
        %v2977 = vld [vmem:[#allocation2 + $0x28] sm:$0xff]
        %v2978 = vld [vmem:[#allocation2 + $0x30] sm:$0xff]
        %v2979 = vld [vmem:[#allocation2 + $0x38] sm:$0xff]
        %v2980 = vld [vmem:[#allocation2 + $0x40] sm:$0xff]
        %v2981 = vld [vmem:[#allocation2 + $0x48] sm:$0xff]
        %v2982 = vld [vmem:[#allocation2 + $0x50] sm:$0xff]
        %v2983 = vld [vmem:[#allocation2 + $0x58] sm:$0xff]
        %v2984 = vld [vmem:[#allocation2 + $0x60] sm:$0xff]
        %v2985 = vld [vmem:[#allocation2 + $0x68] sm:$0xff]
        %v2986 = vld [vmem:[#allocation2 + $0x70] sm:$0xff]
        %v2987 = vld [vmem:[#allocation2 + $0x78] sm:$0xff]
        %vm2988 = vcmask 31744
        %2989 = vst.msk [vmem:[%s517] sm:$0xff] %vm2988, %v2972
        %2990 = vst.msk [vmem:[%s517 + $0x8] sm:$0xff] %vm2988, %v2973
        %2991 = vst.msk [vmem:[%s517 + $0x10] sm:$0xff] %vm2988, %v2974
        %2992 = vst.msk [vmem:[%s517 + $0x18] sm:$0xff] %vm2988, %v2975
        %2993 = vst.msk [vmem:[%s517 + $0x20] sm:$0xff] %vm2988, %v2976
        %2994 = vst.msk [vmem:[%s517 + $0x28] sm:$0xff] %vm2988, %v2977
        %2995 = vst.msk [vmem:[%s517 + $0x30] sm:$0xff] %vm2988, %v2978
        %2996 = vst.msk [vmem:[%s517 + $0x38] sm:$0xff] %vm2988, %v2979
        %2997 = vst.msk [vmem:[%s517 + $0x40] sm:$0xff] %vm2988, %v2980
        %2998 = vst.msk [vmem:[%s517 + $0x48] sm:$0xff] %vm2988, %v2981
        %2999 = vst.msk [vmem:[%s517 + $0x50] sm:$0xff] %vm2988, %v2982
        %3000 = vst.msk [vmem:[%s517 + $0x58] sm:$0xff] %vm2988, %v2983
        %3001 = vst.msk [vmem:[%s517 + $0x60] sm:$0xff] %vm2988, %v2984
        %3002 = vst.msk [vmem:[%s517 + $0x68] sm:$0xff] %vm2988, %v2985
        %3003 = vst.msk [vmem:[%s517 + $0x70] sm:$0xff] %vm2988, %v2986
        %3004 = vst.msk [vmem:[%s517 + $0x78] sm:$0xff] %vm2988, %v2987
      $region84: #{liif_forward.1} parent=75 // pred_fallthru
        _
      %s3005 = smul.u32 16, %s29
      %p3006 = scmp.lt.s32.totalorder %s3005, 15
      %s3007 = scalar_select %p3006, %s3005, 15
      %s3008 = smul.addr %s3007, 8
      %s3009 = scalar_lea.vmem %s14, %s3008
      // Predicated region
      $region85: #{liif_forward.1} parent=75 // pred_check
        %p3010 = pneg %p363
      $region86: #{liif_forward.1} parent=75 // pred_check_branch
        %3012 = sbr.rel (%p3010) target = $region88
      $region87: #{liif_forward.1} parent=75 // pred_region
        %s3013 = smul.u32 16, %s29
      $region88: #{liif_forward.1} parent=75 // pred_fallthru
        _
      // Predicated region
      $region89: #{liif_forward.1} parent=75 // pred_check
        %p3014 = pneg %p363
      $region90: #{liif_forward.1} parent=75 // pred_check_branch
        %3016 = sbr.rel (%p3014) target = $region92
      $region91: #{liif_forward.1} parent=75 // pred_region
        %s3017 = smul.u32 16, %s29
        %p3018 = scmp.lt.s32.totalorder %s3017, 15
        %s3019 = scalar_select %p3018, %s3017, 15
        %s3020 = smul.addr %s3019, 8
        %s3021 = scalar_lea.vmem %s14, %s3020
      $region92: #{liif_forward.1} parent=75 // pred_fallthru
        _
    $region76: #{liif_forward.1} parent=5 // pred_fallthru
      _
    %p3022 = scmp.le.s32.totalorder 2, %s20
    // Predicated region
    $region93: #{liif_forward.1} parent=5 // pred_check
      %p3023 = pneg %p3022
    $region94: #{liif_forward.1} parent=5 // pred_check_branch
      %3025 = sbr.rel (%p3023) target = $region96
    $region95: #{liif_forward.1} parent=5 // pred_region
      %s3026 = ssub.s32 %s20, 2
    $region96: #{liif_forward.1} parent=5 // pred_fallthru
      _
  $region6: #{liif_forward.1} parent=0 // loop_footer
    %s24 = sadd.s32 1, %s20
  $region7: #{liif_forward.1} parent=0 // loop_footer_branch
    %19 = sbr.rel target = $region3
  $region8: #{liif_forward.1} parent=0 // loop_exit
    _

</llo_original>
